<compile_context>
chip_gen: v7x
topology: tpu7x:2x2x1
jax: 0.10.0
libtpu: 0.0.40
codegen_flags: <defaults>
</compile_context>

<pallas_src>
import math
import functools

import jax
import jax.numpy as jnp
from jax.experimental import pallas as pl
from jax.experimental.pallas import tpu as pltpu


def _round_up(x, m):
    return (x + m - 1) // m * m


def _divisor_tile(total, preferred, align):
    """Largest multiple of `align` that divides `total` and is <= preferred (>= align)."""
    t = max(align, (min(total, preferred) // align) * align)
    while total % t:
        t -= align
    return t


def _tpu_vmem_capacity_bytes():
    try:
        return int(pltpu.get_tpu_info().vmem_capacity_bytes)
    except Exception:
        return 64 * 1024 * 1024  # conservative (v7x-sized) fallback


# ---------------------------------------------------------------------------
# Kernel 1: hoisted projection GEMM (all 4 gates at once)
#   gates[m, :] = xh[m, :] @ W_stack + b_stack, tiled over (M, N, K)
# ---------------------------------------------------------------------------
def _proj_kernel(xh_ref, w_ref, b_ref, out_ref, acc_ref):
    k = pl.program_id(2)

    @pl.when(k == 0)
    def _init():
        acc_ref[...] = jnp.zeros_like(acc_ref)

    acc_ref[...] += jnp.dot(xh_ref[...], w_ref[...],
                            preferred_element_type=jnp.float32)

    @pl.when(k == pl.num_programs(2) - 1)
    def _finalize():
        out_ref[...] = (acc_ref[...] + b_ref[...]).astype(out_ref.dtype)


# ---------------------------------------------------------------------------
# Kernel 2: sequential recurrence over time chunks.
#   hout_ref / cout_ref (constant block index) are the resident f32 state
#   carries; they hold the final h_t / c_t after the last grid step.
# ---------------------------------------------------------------------------
def _vlstm_recurrent_kernel(gates_ref, ui_ref, hseq_ref, hout_ref, cout_ref,
                            *, tb, t_total, hp, needs_mask, unroll):
    n = pl.program_id(0)

    @pl.when(n == 0)
    def _init():
        hout_ref[...] = jnp.zeros_like(hout_ref)
        cout_ref[...] = jnp.zeros_like(cout_ref)

    u = ui_ref[...]  # load the (possibly bf16) recurrent weight once per chunk

    def step(i, carry):
        h_prev_state = hout_ref[...]              # (Bp, Hp) f32
        c_prev_state = cout_ref[...]              # (Bp, Hp) f32
        g = gates_ref[i].astype(jnp.float32)      # (Bp, 4*Hp)

        # shared recurrent term (all four gates use u_i + b_i, per the torch code)
        base = jnp.dot(h_prev_state.astype(u.dtype), u,
                       preferred_element_type=jnp.float32)           # (Bp, Hp)
        base4 = jnp.concatenate([base, base, base, base], axis=-1)   # (Bp, 4*Hp)

        # one wide add + one wide sigmoid across all four gate tiles
        act = jax.nn.sigmoid(g + base4)
        i_t = act[:, 0 * hp:1 * hp]
        f_t = act[:, 1 * hp:2 * hp]
        g_t = act[:, 2 * hp:3 * hp]
        o_t = act[:, 3 * hp:4 * hp]

        c_new = f_t + c_prev_state + i_t * g_t
        h_new = o_t + jnp.tanh(c_new)

        if needs_mask:  # freeze state on padded timesteps (only if T was padded)
            valid = (n * tb + i) < t_total
            c_new = jnp.where(valid, c_new, c_prev_state)
            h_new = jnp.where(valid, h_new, h_prev_state)

        cout_ref[...] = c_new
        hout_ref[...] = h_new
        hseq_ref[i] = h_new.astype(hseq_ref.dtype)
        return carry

    jax.lax.fori_loop(0, tb, step, 0, unroll=unroll)


# ---------------------------------------------------------------------------
# Wrapper
# ---------------------------------------------------------------------------
def vlstm_forward(x, h_prev, params, *, compute_dtype=jnp.bfloat16):
    """x: (B, T, Dx), h_prev: (B, T, Dh). Returns (h_t, c_t, hidden_seq)."""
    B, T, Dx = x.shape
    Dh = h_prev.shape[-1]
    H = params["u_i"].shape[0]
    D = Dx + Dh
    f32 = jnp.float32
    cdt = jnp.dtype(compute_dtype)
    cb = cdt.itemsize

    vmem_cap = _tpu_vmem_capacity_bytes()
    vmem_limit = int(min(100 * 1024 * 1024, int(vmem_cap * 0.75)))
    big_vmem = vmem_cap >= 96 * 1024 * 1024   # v5e/v6e (128 MiB) vs v7x (64 MiB)

    # ---- padded, tile-aligned sizes ----
    Bp = _round_up(B, 8)        # sublane-aligned batch
    Hp = _round_up(H, 128)      # lane-aligned hidden
    G4 = 4 * Hp

    # ---- recurrence chunk size from a VMEM budget (generation-aware) ----
    rec_budget = int(vmem_limit * 0.7)
    per_t = Bp * (2 * G4 * cb + 2 * Hp * 4)   # gates chunk (2 bufs) + hseq chunk (2 bufs)
    fixed = Hp * Hp * cb + 4 * Bp * Hp * 4    # u_i (single-buffered) + h/c carries
    tb = int(max(1, min(T, (rec_budget - fixed) // per_t, 64)))
    T_pad = _round_up(T, tb)
    needs_mask = (T_pad != T)
    unroll = next(u for u in (8, 4, 2, 1) if tb % u == 0)

    # ---- stacked weights (rows [0:Dx]=W*_x, [Dx:D]=W*_h; cols zero-padded H->Hp) ----
    def gate_w(wx_, wh_):
        w = jnp.concatenate([wx_, wh_], axis=0).astype(f32)       # (D, H)
        return jnp.pad(w, ((0, 0), (0, Hp - H)))                  # (D, Hp)

    w_stack = jnp.concatenate(
        [gate_w(params["w_i_x"], params["w_i_h"]),
         gate_w(params["w_f_x"], params["w_f_h"]),
         gate_w(params["w_c_x"], params["w_c_h"]),
         gate_w(params["w_o_x"], params["w_o_h"])], axis=1)        # (D, G4)
    b_pad = jnp.pad(params["b_i"].astype(f32), (0, Hp - H))
    b_stack = jnp.tile(b_pad, 4)[None, :]                          # (1, G4), f32
    ui = jnp.pad(params["u_i"].astype(f32),
                 ((0, Hp - H), (0, Hp - H))).astype(cdt)           # (Hp, Hp)

    # ---- K (contraction) tiling: only pad / tile D when it is large ----
    if D > 2048:
        tk = 512
        Dp = _round_up(D, tk)
    else:
        tk = D
        Dp = D
    w_stack = jnp.pad(w_stack, ((0, Dp - D), (0, 0))).astype(cdt)  # (Dp, G4)

    # ---- time-major padded input features (T_pad, Bp, Dp) ----
    xh = jnp.concatenate([x.astype(f32), h_prev.astype(f32)], axis=-1)   # (B, T, D)
    xh = jnp.transpose(xh, (1, 0, 2))                                     # (T, B, D)
    xh = jnp.pad(xh, ((0, T_pad - T), (0, Bp - B), (0, Dp - D))).astype(cdt)
    M = T_pad * Bp
    xh_flat = xh.reshape(M, Dp)

    # ---- GEMM tile sizes: divisors of M / G4 so no post-GEMM slice copy ----
    tm = _divisor_tile(M, 512 if big_vmem else 256, 8)
    tn = _divisor_tile(G4, 512 if big_vmem else 256, 128)
    # megacore: ensure >= 2 blocks on a parallel axis whenever possible
    if (M // tm) * (G4 // tn) < 2 and G4 >= 256:
        tn = _divisor_tile(G4, G4 // 2, 128)

    gemm_budget = int(vmem_limit * 0.7)

    def gemm_vmem(tm_, tn_, tk_):
        w_bufs = 1 if (tn_ == G4 and tk_ == Dp) else 2
        return (2 * tm_ * tk_ * cb + w_bufs * tk_ * tn_ * cb
                + 2 * tm_ * tn_ * cb + tm_ * tn_ * 4 + 2 * tn_ * 4)

    while gemm_vmem(tm, tn, tk) > gemm_budget:
        if tm > 8:
            tm = _divisor_tile(M, tm // 2, 8)
        elif tn > 128:
            tn = _divisor_tile(G4, tn // 2, 128)
        else:
            break

    grid_m, grid_n, grid_k = M // tm, G4 // tn, Dp // tk

    # single-buffer operands whose block index never changes across the grid
    w_kwargs = {"pipeline_mode": pl.Buffered(1)} if (grid_n == 1 and grid_k == 1) else {}
    b_kwargs = {"pipeline_mode": pl.Buffered(1)} if grid_n == 1 else {}

    gates_flat = pl.pallas_call(
        _proj_kernel,
        out_shape=jax.ShapeDtypeStruct((M, G4), cdt),
        grid_spec=pltpu.PrefetchScalarGridSpec(
            num_scalar_prefetch=0,
            grid=(grid_m, grid_n, grid_k),
            in_specs=[
                pl.BlockSpec((tm, tk), lambda i, j, k: (i, k)),
                pl.BlockSpec((tk, tn), lambda i, j, k: (k, j), **w_kwargs),
                pl.BlockSpec((1, tn), lambda i, j, k: (0, j), **b_kwargs),
            ],
            out_specs=pl.BlockSpec((tm, tn), lambda i, j, k: (i, j)),
            scratch_shapes=[pltpu.VMEM((tm, tn), jnp.float32)],
        ),
        compiler_params=pltpu.CompilerParams(
            dimension_semantics=("parallel", "parallel", "arbitrary"),
            vmem_limit_bytes=vmem_limit),
    )(xh_flat, w_stack, b_stack)

    # row-major reshape: free (tm divides M, so there is no padded-row slice)
    gates = gates_flat.reshape(T_pad, Bp, G4)

    # ---- recurrent scan kernel ----
    num_chunks = T_pad // tb
    kernel = functools.partial(
        _vlstm_recurrent_kernel,
        tb=tb, t_total=T, hp=Hp, needs_mask=needs_mask, unroll=unroll)

    hseq_p, h_t_p, c_t_p = pl.pallas_call(
        kernel,
        out_shape=(
            jax.ShapeDtypeStruct((T_pad, Bp, Hp), f32),   # hidden_seq (time-major)
            jax.ShapeDtypeStruct((Bp, Hp), f32),          # final h_t
            jax.ShapeDtypeStruct((Bp, Hp), f32),          # final c_t
        ),
        grid_spec=pltpu.PrefetchScalarGridSpec(
            num_scalar_prefetch=0,
            grid=(num_chunks,),
            in_specs=[
                pl.BlockSpec((tb, Bp, G4), lambda n: (n, 0, 0)),
                pl.BlockSpec((Hp, Hp), lambda n: (0, 0),
                             pipeline_mode=pl.Buffered(1)),
            ],
            out_specs=[
                pl.BlockSpec((tb, Bp, Hp), lambda n: (n, 0, 0)),
                pl.BlockSpec((Bp, Hp), lambda n: (0, 0)),
                pl.BlockSpec((Bp, Hp), lambda n: (0, 0)),
            ],
        ),
        compiler_params=pltpu.CompilerParams(
            dimension_semantics=("arbitrary",),           # sequential recurrence
            vmem_limit_bytes=vmem_limit),
    )(gates, ui)

    hidden_seq = jnp.transpose(hseq_p[:T, :B, :H], (1, 0, 2))   # (B, T, H)
    return h_t_p[:B, :H], c_t_p[:B, :H], hidden_seq


# ---------------------------------------------------------------------------
# Pure-JAX reference mirroring the PyTorch forward loop
# ---------------------------------------------------------------------------
def vlstm_reference(x, h_prev, params):
    B, T, _ = x.shape
    H = params["u_i"].shape[0]
    h_t = jnp.zeros((B, H), jnp.float32)
    c_t = jnp.zeros((B, H), jnp.float32)
    seq = []
    for t in range(T):
        x_t = x[:, t, :]
        hp_t = h_prev[:, t, :]
        base = h_t @ params["u_i"] + params["b_i"]
        i_t = jax.nn.sigmoid(x_t @ params["w_i_x"] + hp_t @ params["w_i_h"] + base)
        f_t = jax.nn.sigmoid(x_t @ params["w_f_x"] + hp_t @ params["w_f_h"] + base)
        g_t = jax.nn.sigmoid(x_t @ params["w_c_x"] + hp_t @ params["w_c_h"] + base)
        o_t = jax.nn.sigmoid(x_t @ params["w_o_x"] + hp_t @ params["w_o_h"] + base)
        c_t = f_t + c_t + i_t * g_t
        h_t = o_t + jnp.tanh(c_t)
        seq.append(h_t[None])
    hidden_seq = jnp.transpose(jnp.concatenate(seq, axis=0), (1, 0, 2))
    return h_t, c_t, hidden_seq


def init_params(key, input_size_x, input_size_h, hidden_size):
    stdv = 1.0 / math.sqrt(hidden_size)
    names_shapes = [
        ("w_i_x", (input_size_x, hidden_size)),
        ("w_i_h", (input_size_h, hidden_size)),
        ("u_i", (hidden_size, hidden_size)),
        ("b_i", (hidden_size,)),
        ("w_f_x", (input_size_x, hidden_size)),
        ("w_f_h", (input_size_h, hidden_size)),
        ("u_f", (hidden_size, hidden_size)),
        ("b_f", (hidden_size,)),
        ("w_c_x", (input_size_x, hidden_size)),
        ("w_c_h", (input_size_h, hidden_size)),
        ("u_c", (hidden_size, hidden_size)),
        ("b_c", (hidden_size,)),
        ("w_o_x", (input_size_x, hidden_size)),
        ("w_o_h", (input_size_h, hidden_size)),
        ("u_o", (hidden_size, hidden_size)),
        ("b_o", (hidden_size,)),
    ]
    keys = jax.random.split(key, len(names_shapes))
    params = {}
    for (name, shape), k in zip(names_shapes, keys):
        params[name] = jax.random.uniform(
            k, shape, jnp.float32, minval=-stdv, maxval=stdv)
    return params


if __name__ == "__main__":
    batch_size = 2
    seq_len = 8
    input_size_x = 16
    input_size_h = 16
    hidden_size = 32

    key = jax.random.PRNGKey(0)
    kp, kx, kh = jax.random.split(key, 3)

    params = init_params(kp, input_size_x, input_size_h, hidden_size)
    x = jax.random.normal(kx, (batch_size, seq_len, input_size_x), jnp.float32)
    h_prev = jax.random.normal(kh, (batch_size, seq_len, input_size_h), jnp.float32)

    h_ref, c_ref, seq_ref = vlstm_reference(x, h_prev, params)

    # f32 path: exact-semantics check against the reference.
    fwd_f32 = jax.jit(functools.partial(vlstm_forward, params=params,
                                        compute_dtype=jnp.float32))
    h32, c32, s32 = jax.block_until_ready(fwd_f32(x, h_prev))
    assert h32.shape == (batch_size, hidden_size)
    assert c32.shape == (batch_size, hidden_size)
    assert s32.shape == (batch_size, seq_len, hidden_size)
    assert jnp.allclose(h32, h_ref, atol=1e-4, rtol=1e-4)
    assert jnp.allclose(c32, c_ref, atol=1e-4, rtol=1e-4)
    assert jnp.allclose(s32, seq_ref, atol=1e-4, rtol=1e-4)

    # bf16 path: production (MXU-native) configuration, looser tolerance.
    fwd_bf16 = jax.jit(functools.partial(vlstm_forward, params=params,
                                         compute_dtype=jnp.bfloat16))
    h16, c16, s16 = jax.block_until_ready(fwd_bf16(x, h_prev))
    assert h16.shape == (batch_size, hidden_size)
    assert c16.shape == (batch_size, hidden_size)
    assert s16.shape == (batch_size, seq_len, hidden_size)
    assert jnp.allclose(h16, h_ref, atol=1.5e-1, rtol=1e-1)
    assert jnp.allclose(c16, c_ref, atol=1.5e-1, rtol=1e-1)
    assert jnp.allclose(s16, seq_ref, atol=1.5e-1, rtol=1e-1)

    print("KERNEL_OK")
</pallas_src>

<mosaic_0001>
module attributes {stable_mosaic.version = 11 : i64} {
  func.func @_proj_kernel(%arg0: i32, %arg1: i32, %arg2: i32, %arg3: memref<64x32xf32, #tpu.memory_space<vmem>>, %arg4: memref<32x256xf32, #tpu.memory_space<vmem>>, %arg5: memref<1x256xf32, #tpu.memory_space<vmem>>, %arg6: memref<64x256xf32, #tpu.memory_space<vmem>>, %arg7: memref<64x256xf32, #tpu.memory_space<vmem>>) attributes {dimension_semantics = [#tpu.dimension_semantics<parallel>, #tpu.dimension_semantics<parallel>, #tpu.dimension_semantics<arbitrary>], iteration_bounds = array<i64: 1, 2, 1>, scalar_prefetch = 0 : i64, scratch_operands = 1 : i64, tpu.core_type = #tpu.core_type<tc>, window_params = [{transform_indices = @transform_0, window_bounds = array<i64: 64, 32>}, {transform_indices = @transform_1, window_bounds = array<i64: 32, 256>}, {transform_indices = @transform_2, window_bounds = array<i64: 1, 256>}, {transform_indices = @transform_3, window_bounds = array<i64: 64, 256>}]} {
    %c0_i32 = arith.constant 0 : i32
    %0 = arith.cmpi eq, %arg2, %c0_i32 : i32
    %1 = arith.extui %0 : i1 to i32
    %c0_i32_0 = arith.constant 0 : i32
    %2 = arith.cmpi ne, %1, %c0_i32_0 : i32
    scf.if %2 {
      %cst_10 = arith.constant 0.000000e+00 : f32
      %12 = vector.broadcast %cst_10 : f32 to vector<64x256xf32>
      %c0_11 = arith.constant 0 : index
      %c0_12 = arith.constant 0 : index
      %13 = vector.load %arg7[%c0_11, %c0_12] : memref<64x256xf32, #tpu.memory_space<vmem>>, vector<64x256xf32>
      tpu.vector_store %arg7[%c0_11, %c0_12], %12 {strides = array<i32>} : memref<64x256xf32, #tpu.memory_space<vmem>>, vector<64x256xf32>,
    } else {
    }
    %c0 = arith.constant 0 : index
    %c0_1 = arith.constant 0 : index
    %3 = vector.load %arg7[%c0, %c0_1] : memref<64x256xf32, #tpu.memory_space<vmem>>, vector<64x256xf32>
    %c0_2 = arith.constant 0 : index
    %c0_3 = arith.constant 0 : index
    %4 = vector.load %arg3[%c0_2, %c0_3] : memref<64x32xf32, #tpu.memory_space<vmem>>, vector<64x32xf32>
    %c0_4 = arith.constant 0 : index
    %c0_5 = arith.constant 0 : index
    %5 = vector.load %arg4[%c0_4, %c0_5] : memref<32x256xf32, #tpu.memory_space<vmem>>, vector<32x256xf32>
    %cst = arith.constant dense<0.000000e+00> : vector<64x256xf32>
    %6 = tpu.matmul %4, %5, %cst {dimension_numbers = #tpu.dot_dimension_numbers<[1], [0], [0], [1], [0, 0, 1, 1], [], []>} : vector<64x32xf32>, vector<32x256xf32>, vector<64x256xf32> -> vector<64x256xf32>
    %7 = arith.addf %3, %6 : vector<64x256xf32>
    %c0_6 = arith.constant 0 : index
    %c0_7 = arith.constant 0 : index
    %8 = vector.load %arg7[%c0_6, %c0_7] : memref<64x256xf32, #tpu.memory_space<vmem>>, vector<64x256xf32>
    tpu.vector_store %arg7[%c0_6, %c0_7], %7 {strides = array<i32>} : memref<64x256xf32, #tpu.memory_space<vmem>>, vector<64x256xf32>,
    %c0_i32_8 = arith.constant 0 : i32
    %9 = arith.cmpi eq, %arg2, %c0_i32_8 : i32
    %10 = arith.extui %9 : i1 to i32
    %c0_i32_9 = arith.constant 0 : i32
    %11 = arith.cmpi ne, %10, %c0_i32_9 : i32
    scf.if %11 {
      %c0_10 = arith.constant 0 : index
      %c0_11 = arith.constant 0 : index
      %12 = vector.load %arg7[%c0_10, %c0_11] : memref<64x256xf32, #tpu.memory_space<vmem>>, vector<64x256xf32>
      %c0_12 = arith.constant 0 : index
      %c0_13 = arith.constant 0 : index
      %13 = vector.load %arg5[%c0_12, %c0_13] : memref<1x256xf32, #tpu.memory_space<vmem>>, vector<1x256xf32>
      %14 = vector.broadcast %13 : vector<1x256xf32> to vector<64x256xf32>
      %15 = arith.addf %12, %14 : vector<64x256xf32>
      %c0_14 = arith.constant 0 : index
      %c0_15 = arith.constant 0 : index
      %16 = vector.load %arg6[%c0_14, %c0_15] : memref<64x256xf32, #tpu.memory_space<vmem>>, vector<64x256xf32>
      tpu.vector_store %arg6[%c0_14, %c0_15], %15 {strides = array<i32>} : memref<64x256xf32, #tpu.memory_space<vmem>>, vector<64x256xf32>,
    } else {
    }
    return
  }
  func.func @transform_0(%arg0: i32, %arg1: i32, %arg2: i32) -> (i32, i32) {
    %c0_i32 = arith.constant 0 : i32
    return %arg0, %arg2 : i32, i32
  }
  func.func @transform_1(%arg0: i32, %arg1: i32, %arg2: i32) -> (i32, i32) {
    %c0_i32 = arith.constant 0 : i32
    return %arg2, %arg1 : i32, i32
  }
  func.func @transform_2(%arg0: i32, %arg1: i32, %arg2: i32) -> (i32, i32) {
    %c0_i32 = arith.constant 0 : i32
    %c0_i32_0 = arith.constant 0 : i32
    return %c0_i32, %arg1 : i32, i32
  }
  func.func @transform_3(%arg0: i32, %arg1: i32, %arg2: i32) -> (i32, i32) {
    %c0_i32 = arith.constant 0 : i32
    return %arg0, %arg1 : i32, i32
  }
}

module attributes {stable_mosaic.version = 11 : i64} {
  func.func @_vlstm_recurrent_kernel(%arg0: i32, %arg1: memref<8x8x512xf32, #tpu.memory_space<vmem>>, %arg2: memref<128x128xf32, #tpu.memory_space<vmem>>, %arg3: memref<8x8x128xf32, #tpu.memory_space<vmem>>, %arg4: memref<8x128xf32, #tpu.memory_space<vmem>>, %arg5: memref<8x128xf32, #tpu.memory_space<vmem>>) attributes {dimension_semantics = [#tpu.dimension_semantics<arbitrary>], iteration_bounds = array<i64: 1>, scalar_prefetch = 0 : i64, scratch_operands = 0 : i64, tpu.core_type = #tpu.core_type<tc>, window_params = [{transform_indices = @transform_0, window_bounds = array<i64: 8, 8, 512>}, {pipeline_mode = #tpu.pipeline_mode<synchronous>, transform_indices = @transform_1, window_bounds = array<i64: 128, 128>}, {transform_indices = @transform_2, window_bounds = array<i64: 8, 8, 128>}, {pipeline_mode = #tpu.pipeline_mode<synchronous>, transform_indices = @transform_3, window_bounds = array<i64: 8, 128>}, {pipeline_mode = #tpu.pipeline_mode<synchronous>, transform_indices = @transform_4, window_bounds = array<i64: 8, 128>}]} {
    %c0_i32 = arith.constant 0 : i32
    %0 = arith.cmpi eq, %arg0, %c0_i32 : i32
    %1 = arith.extui %0 : i1 to i32
    %c0_i32_0 = arith.constant 0 : i32
    %2 = arith.cmpi ne, %1, %c0_i32_0 : i32
    scf.if %2 {
      %cst_114 = arith.constant 0.000000e+00 : f32
      %228 = vector.broadcast %cst_114 : f32 to vector<8x128xf32>
      %c0_115 = arith.constant 0 : index
      %c0_116 = arith.constant 0 : index
      %229 = vector.load %arg4[%c0_115, %c0_116] : memref<8x128xf32, #tpu.memory_space<vmem>>, vector<8x128xf32>
      tpu.vector_store %arg4[%c0_115, %c0_116], %228 {strides = array<i32>} : memref<8x128xf32, #tpu.memory_space<vmem>>, vector<8x128xf32>,
      %cst_117 = arith.constant 0.000000e+00 : f32
      %230 = vector.broadcast %cst_117 : f32 to vector<8x128xf32>
      %c0_118 = arith.constant 0 : index
      %c0_119 = arith.constant 0 : index
      %231 = vector.load %arg5[%c0_118, %c0_119] : memref<8x128xf32, #tpu.memory_space<vmem>>, vector<8x128xf32>
      tpu.vector_store %arg5[%c0_118, %c0_119], %230 {strides = array<i32>} : memref<8x128xf32, #tpu.memory_space<vmem>>, vector<8x128xf32>,
    } else {
    }
    %c0 = arith.constant 0 : index
    %c0_1 = arith.constant 0 : index
    %3 = vector.load %arg2[%c0, %c0_1] : memref<128x128xf32, #tpu.memory_space<vmem>>, vector<128x128xf32>
    %c0_i32_2 = arith.constant 0 : i32
    %c0_3 = arith.constant 0 : index
    %c0_4 = arith.constant 0 : index
    %4 = vector.load %arg4[%c0_3, %c0_4] : memref<8x128xf32, #tpu.memory_space<vmem>>, vector<8x128xf32>
    %c0_5 = arith.constant 0 : index
    %c0_6 = arith.constant 0 : index
    %5 = vector.load %arg5[%c0_5, %c0_6] : memref<8x128xf32, #tpu.memory_space<vmem>>, vector<8x128xf32>
    %6 = arith.index_cast %c0_i32_2 : i32 to index
    %c0_7 = arith.constant 0 : index
    %c0_8 = arith.constant 0 : index
    %7 = vector.load %arg1[%6, %c0_7, %c0_8] : memref<8x8x512xf32, #tpu.memory_space<vmem>>, vector<1x8x512xf32>
    %8 = vector.shape_cast %7 : vector<1x8x512xf32> to vector<8x512xf32>
    %cst = arith.constant dense<0.000000e+00> : vector<8x128xf32>
    %9 = tpu.matmul %4, %3, %cst {dimension_numbers = #tpu.dot_dimension_numbers<[1], [0], [0], [1], [0, 0, 1, 1], [], []>} : vector<8x128xf32>, vector<128x128xf32>, vector<8x128xf32> -> vector<8x128xf32>
    %10 = tpu.concatenate %9, %9, %9, %9 in 1 : vector<8x128xf32>, vector<8x128xf32>, vector<8x128xf32>, vector<8x128xf32> -> vector<8x512xf32>
    %11 = arith.addf %8, %10 : vector<8x512xf32>
    %12 = arith.negf %11 : vector<8x512xf32>
    %13 = math.exp %12 : vector<8x512xf32>
    %cst_9 = arith.constant 1.000000e+00 : f32
    %14 = vector.broadcast %cst_9 : f32 to vector<8x512xf32>
    %15 = arith.addf %14, %13 : vector<8x512xf32>
    %16 = arith.divf %14, %15 : vector<8x512xf32>
    %17 = vector.extract_strided_slice %16 {offsets = [0, 0], sizes = [8, 128], strides = [1, 1]} : vector<8x512xf32> to vector<8x128xf32>
    %18 = vector.extract_strided_slice %16 {offsets = [0, 128], sizes = [8, 128], strides = [1, 1]} : vector<8x512xf32> to vector<8x128xf32>
    %19 = vector.extract_strided_slice %16 {offsets = [0, 256], sizes = [8, 128], strides = [1, 1]} : vector<8x512xf32> to vector<8x128xf32>
    %20 = vector.extract_strided_slice %16 {offsets = [0, 384], sizes = [8, 128], strides = [1, 1]} : vector<8x512xf32> to vector<8x128xf32>
    %21 = arith.addf %18, %5 : vector<8x128xf32>
    %22 = arith.mulf %17, %19 : vector<8x128xf32>
    %23 = arith.addf %21, %22 : vector<8x128xf32>
    %24 = math.tanh %23 : vector<8x128xf32>
    %25 = arith.addf %20, %24 : vector<8x128xf32>
    %c0_10 = arith.constant 0 : index
    %c0_11 = arith.constant 0 : index
    %26 = vector.load %arg5[%c0_10, %c0_11] : memref<8x128xf32, #tpu.memory_space<vmem>>, vector<8x128xf32>
    tpu.vector_store %arg5[%c0_10, %c0_11], %23 {strides = array<i32>} : memref<8x128xf32, #tpu.memory_space<vmem>>, vector<8x128xf32>,
    %c0_12 = arith.constant 0 : index
    %c0_13 = arith.constant 0 : index
    %27 = vector.load %arg4[%c0_12, %c0_13] : memref<8x128xf32, #tpu.memory_space<vmem>>, vector<8x128xf32>
    tpu.vector_store %arg4[%c0_12, %c0_13], %25 {strides = array<i32>} : memref<8x128xf32, #tpu.memory_space<vmem>>, vector<8x128xf32>,
    %28 = arith.index_cast %c0_i32_2 : i32 to index
    %c0_14 = arith.constant 0 : index
    %c0_15 = arith.constant 0 : index
    %29 = vector.load %arg3[%28, %c0_14, %c0_15] : memref<8x8x128xf32, #tpu.memory_space<vmem>>, vector<1x8x128xf32>
    %30 = vector.shape_cast %29 : vector<1x8x128xf32> to vector<8x128xf32>
    %31 = vector.shape_cast %25 : vector<8x128xf32> to vector<1x8x128xf32>
    tpu.vector_store %arg3[%28, %c0_14, %c0_15], %31 {strides = array<i32>} : memref<8x8x128xf32, #tpu.memory_space<vmem>>, vector<1x8x128xf32>,
    %c1_i32 = arith.constant 1 : i32
    %c0_16 = arith.constant 0 : index
    %c0_17 = arith.constant 0 : index
    %32 = vector.load %arg4[%c0_16, %c0_17] : memref<8x128xf32, #tpu.memory_space<vmem>>, vector<8x128xf32>
    %c0_18 = arith.constant 0 : index
    %c0_19 = arith.constant 0 : index
    %33 = vector.load %arg5[%c0_18, %c0_19] : memref<8x128xf32, #tpu.memory_space<vmem>>, vector<8x128xf32>
    %34 = arith.index_cast %c1_i32 : i32 to index
    %c0_20 = arith.constant 0 : index
    %c0_21 = arith.constant 0 : index
    %35 = vector.load %arg1[%34, %c0_20, %c0_21] : memref<8x8x512xf32, #tpu.memory_space<vmem>>, vector<1x8x512xf32>
    %36 = vector.shape_cast %35 : vector<1x8x512xf32> to vector<8x512xf32>
    %cst_22 = arith.constant dense<0.000000e+00> : vector<8x128xf32>
    %37 = tpu.matmul %32, %3, %cst_22 {dimension_numbers = #tpu.dot_dimension_numbers<[1], [0], [0], [1], [0, 0, 1, 1], [], []>} : vector<8x128xf32>, vector<128x128xf32>, vector<8x128xf32> -> vector<8x128xf32>
    %38 = tpu.concatenate %37, %37, %37, %37 in 1 : vector<8x128xf32>, vector<8x128xf32>, vector<8x128xf32>, vector<8x128xf32> -> vector<8x512xf32>
    %39 = arith.addf %36, %38 : vector<8x512xf32>
    %40 = arith.negf %39 : vector<8x512xf32>
    %41 = math.exp %40 : vector<8x512xf32>
    %cst_23 = arith.constant 1.000000e+00 : f32
    %42 = vector.broadcast %cst_23 : f32 to vector<8x512xf32>
    %43 = arith.addf %42, %41 : vector<8x512xf32>
    %44 = arith.divf %42, %43 : vector<8x512xf32>
    %45 = vector.extract_strided_slice %44 {offsets = [0, 0], sizes = [8, 128], strides = [1, 1]} : vector<8x512xf32> to vector<8x128xf32>
    %46 = vector.extract_strided_slice %44 {offsets = [0, 128], sizes = [8, 128], strides = [1, 1]} : vector<8x512xf32> to vector<8x128xf32>
    %47 = vector.extract_strided_slice %44 {offsets = [0, 256], sizes = [8, 128], strides = [1, 1]} : vector<8x512xf32> to vector<8x128xf32>
    %48 = vector.extract_strided_slice %44 {offsets = [0, 384], sizes = [8, 128], strides = [1, 1]} : vector<8x512xf32> to vector<8x128xf32>
    %49 = arith.addf %46, %33 : vector<8x128xf32>
    %50 = arith.mulf %45, %47 : vector<8x128xf32>
    %51 = arith.addf %49, %50 : vector<8x128xf32>
    %52 = math.tanh %51 : vector<8x128xf32>
    %53 = arith.addf %48, %52 : vector<8x128xf32>
    %c0_24 = arith.constant 0 : index
    %c0_25 = arith.constant 0 : index
    %54 = vector.load %arg5[%c0_24, %c0_25] : memref<8x128xf32, #tpu.memory_space<vmem>>, vector<8x128xf32>
    tpu.vector_store %arg5[%c0_24, %c0_25], %51 {strides = array<i32>} : memref<8x128xf32, #tpu.memory_space<vmem>>, vector<8x128xf32>,
    %c0_26 = arith.constant 0 : index
    %c0_27 = arith.constant 0 : index
    %55 = vector.load %arg4[%c0_26, %c0_27] : memref<8x128xf32, #tpu.memory_space<vmem>>, vector<8x128xf32>
    tpu.vector_store %arg4[%c0_26, %c0_27], %53 {strides = array<i32>} : memref<8x128xf32, #tpu.memory_space<vmem>>, vector<8x128xf32>,
    %56 = arith.index_cast %c1_i32 : i32 to index
    %c0_28 = arith.constant 0 : index
    %c0_29 = arith.constant 0 : index
    %57 = vector.load %arg3[%56, %c0_28, %c0_29] : memref<8x8x128xf32, #tpu.memory_space<vmem>>, vector<1x8x128xf32>
    %58 = vector.shape_cast %57 : vector<1x8x128xf32> to vector<8x128xf32>
    %59 = vector.shape_cast %53 : vector<8x128xf32> to vector<1x8x128xf32>
    tpu.vector_store %arg3[%56, %c0_28, %c0_29], %59 {strides = array<i32>} : memref<8x8x128xf32, #tpu.memory_space<vmem>>, vector<1x8x128xf32>,
    %c2_i32 = arith.constant 2 : i32
    %c0_30 = arith.constant 0 : index
    %c0_31 = arith.constant 0 : index
    %60 = vector.load %arg4[%c0_30, %c0_31] : memref<8x128xf32, #tpu.memory_space<vmem>>, vector<8x128xf32>
    %c0_32 = arith.constant 0 : index
    %c0_33 = arith.constant 0 : index
    %61 = vector.load %arg5[%c0_32, %c0_33] : memref<8x128xf32, #tpu.memory_space<vmem>>, vector<8x128xf32>
    %62 = arith.index_cast %c2_i32 : i32 to index
    %c0_34 = arith.constant 0 : index
    %c0_35 = arith.constant 0 : index
    %63 = vector.load %arg1[%62, %c0_34, %c0_35] : memref<8x8x512xf32, #tpu.memory_space<vmem>>, vector<1x8x512xf32>
    %64 = vector.shape_cast %63 : vector<1x8x512xf32> to vector<8x512xf32>
    %cst_36 = arith.constant dense<0.000000e+00> : vector<8x128xf32>
    %65 = tpu.matmul %60, %3, %cst_36 {dimension_numbers = #tpu.dot_dimension_numbers<[1], [0], [0], [1], [0, 0, 1, 1], [], []>} : vector<8x128xf32>, vector<128x128xf32>, vector<8x128xf32> -> vector<8x128xf32>
    %66 = tpu.concatenate %65, %65, %65, %65 in 1 : vector<8x128xf32>, vector<8x128xf32>, vector<8x128xf32>, vector<8x128xf32> -> vector<8x512xf32>
    %67 = arith.addf %64, %66 : vector<8x512xf32>
    %68 = arith.negf %67 : vector<8x512xf32>
    %69 = math.exp %68 : vector<8x512xf32>
    %cst_37 = arith.constant 1.000000e+00 : f32
    %70 = vector.broadcast %cst_37 : f32 to vector<8x512xf32>
    %71 = arith.addf %70, %69 : vector<8x512xf32>
    %72 = arith.divf %70, %71 : vector<8x512xf32>
    %73 = vector.extract_strided_slice %72 {offsets = [0, 0], sizes = [8, 128], strides = [1, 1]} : vector<8x512xf32> to vector<8x128xf32>
    %74 = vector.extract_strided_slice %72 {offsets = [0, 128], sizes = [8, 128], strides = [1, 1]} : vector<8x512xf32> to vector<8x128xf32>
    %75 = vector.extract_strided_slice %72 {offsets = [0, 256], sizes = [8, 128], strides = [1, 1]} : vector<8x512xf32> to vector<8x128xf32>
    %76 = vector.extract_strided_slice %72 {offsets = [0, 384], sizes = [8, 128], strides = [1, 1]} : vector<8x512xf32> to vector<8x128xf32>
    %77 = arith.addf %74, %61 : vector<8x128xf32>
    %78 = arith.mulf %73, %75 : vector<8x128xf32>
    %79 = arith.addf %77, %78 : vector<8x128xf32>
    %80 = math.tanh %79 : vector<8x128xf32>
    %81 = arith.addf %76, %80 : vector<8x128xf32>
    %c0_38 = arith.constant 0 : index
    %c0_39 = arith.constant 0 : index
    %82 = vector.load %arg5[%c0_38, %c0_39] : memref<8x128xf32, #tpu.memory_space<vmem>>, vector<8x128xf32>
    tpu.vector_store %arg5[%c0_38, %c0_39], %79 {strides = array<i32>} : memref<8x128xf32, #tpu.memory_space<vmem>>, vector<8x128xf32>,
    %c0_40 = arith.constant 0 : index
    %c0_41 = arith.constant 0 : index
    %83 = vector.load %arg4[%c0_40, %c0_41] : memref<8x128xf32, #tpu.memory_space<vmem>>, vector<8x128xf32>
    tpu.vector_store %arg4[%c0_40, %c0_41], %81 {strides = array<i32>} : memref<8x128xf32, #tpu.memory_space<vmem>>, vector<8x128xf32>,
    %84 = arith.index_cast %c2_i32 : i32 to index
    %c0_42 = arith.constant 0 : index
    %c0_43 = arith.constant 0 : index
    %85 = vector.load %arg3[%84, %c0_42, %c0_43] : memref<8x8x128xf32, #tpu.memory_space<vmem>>, vector<1x8x128xf32>
    %86 = vector.shape_cast %85 : vector<1x8x128xf32> to vector<8x128xf32>
    %87 = vector.shape_cast %81 : vector<8x128xf32> to vector<1x8x128xf32>
    tpu.vector_store %arg3[%84, %c0_42, %c0_43], %87 {strides = array<i32>} : memref<8x8x128xf32, #tpu.memory_space<vmem>>, vector<1x8x128xf32>,
    %c3_i32 = arith.constant 3 : i32
    %c0_44 = arith.constant 0 : index
    %c0_45 = arith.constant 0 : index
    %88 = vector.load %arg4[%c0_44, %c0_45] : memref<8x128xf32, #tpu.memory_space<vmem>>, vector<8x128xf32>
    %c0_46 = arith.constant 0 : index
    %c0_47 = arith.constant 0 : index
    %89 = vector.load %arg5[%c0_46, %c0_47] : memref<8x128xf32, #tpu.memory_space<vmem>>, vector<8x128xf32>
    %90 = arith.index_cast %c3_i32 : i32 to index
    %c0_48 = arith.constant 0 : index
    %c0_49 = arith.constant 0 : index
    %91 = vector.load %arg1[%90, %c0_48, %c0_49] : memref<8x8x512xf32, #tpu.memory_space<vmem>>, vector<1x8x512xf32>
    %92 = vector.shape_cast %91 : vector<1x8x512xf32> to vector<8x512xf32>
    %cst_50 = arith.constant dense<0.000000e+00> : vector<8x128xf32>
    %93 = tpu.matmul %88, %3, %cst_50 {dimension_numbers = #tpu.dot_dimension_numbers<[1], [0], [0], [1], [0, 0, 1, 1], [], []>} : vector<8x128xf32>, vector<128x128xf32>, vector<8x128xf32> -> vector<8x128xf32>
    %94 = tpu.concatenate %93, %93, %93, %93 in 1 : vector<8x128xf32>, vector<8x128xf32>, vector<8x128xf32>, vector<8x128xf32> -> vector<8x512xf32>
    %95 = arith.addf %92, %94 : vector<8x512xf32>
    %96 = arith.negf %95 : vector<8x512xf32>
    %97 = math.exp %96 : vector<8x512xf32>
    %cst_51 = arith.constant 1.000000e+00 : f32
    %98 = vector.broadcast %cst_51 : f32 to vector<8x512xf32>
    %99 = arith.addf %98, %97 : vector<8x512xf32>
    %100 = arith.divf %98, %99 : vector<8x512xf32>
    %101 = vector.extract_strided_slice %100 {offsets = [0, 0], sizes = [8, 128], strides = [1, 1]} : vector<8x512xf32> to vector<8x128xf32>
    %102 = vector.extract_strided_slice %100 {offsets = [0, 128], sizes = [8, 128], strides = [1, 1]} : vector<8x512xf32> to vector<8x128xf32>
    %103 = vector.extract_strided_slice %100 {offsets = [0, 256], sizes = [8, 128], strides = [1, 1]} : vector<8x512xf32> to vector<8x128xf32>
    %104 = vector.extract_strided_slice %100 {offsets = [0, 384], sizes = [8, 128], strides = [1, 1]} : vector<8x512xf32> to vector<8x128xf32>
    %105 = arith.addf %102, %89 : vector<8x128xf32>
    %106 = arith.mulf %101, %103 : vector<8x128xf32>
    %107 = arith.addf %105, %106 : vector<8x128xf32>
    %108 = math.tanh %107 : vector<8x128xf32>
    %109 = arith.addf %104, %108 : vector<8x128xf32>
    %c0_52 = arith.constant 0 : index
    %c0_53 = arith.constant 0 : index
    %110 = vector.load %arg5[%c0_52, %c0_53] : memref<8x128xf32, #tpu.memory_space<vmem>>, vector<8x128xf32>
    tpu.vector_store %arg5[%c0_52, %c0_53], %107 {strides = array<i32>} : memref<8x128xf32, #tpu.memory_space<vmem>>, vector<8x128xf32>,
    %c0_54 = arith.constant 0 : index
    %c0_55 = arith.constant 0 : index
    %111 = vector.load %arg4[%c0_54, %c0_55] : memref<8x128xf32, #tpu.memory_space<vmem>>, vector<8x128xf32>
    tpu.vector_store %arg4[%c0_54, %c0_55], %109 {strides = array<i32>} : memref<8x128xf32, #tpu.memory_space<vmem>>, vector<8x128xf32>,
    %112 = arith.index_cast %c3_i32 : i32 to index
    %c0_56 = arith.constant 0 : index
    %c0_57 = arith.constant 0 : index
    %113 = vector.load %arg3[%112, %c0_56, %c0_57] : memref<8x8x128xf32, #tpu.memory_space<vmem>>, vector<1x8x128xf32>
    %114 = vector.shape_cast %113 : vector<1x8x128xf32> to vector<8x128xf32>
    %115 = vector.shape_cast %109 : vector<8x128xf32> to vector<1x8x128xf32>
    tpu.vector_store %arg3[%112, %c0_56, %c0_57], %115 {strides = array<i32>} : memref<8x8x128xf32, #tpu.memory_space<vmem>>, vector<1x8x128xf32>,
    %c4_i32 = arith.constant 4 : i32
    %c0_58 = arith.constant 0 : index
    %c0_59 = arith.constant 0 : index
    %116 = vector.load %arg4[%c0_58, %c0_59] : memref<8x128xf32, #tpu.memory_space<vmem>>, vector<8x128xf32>
    %c0_60 = arith.constant 0 : index
    %c0_61 = arith.constant 0 : index
    %117 = vector.load %arg5[%c0_60, %c0_61] : memref<8x128xf32, #tpu.memory_space<vmem>>, vector<8x128xf32>
    %118 = arith.index_cast %c4_i32 : i32 to index
    %c0_62 = arith.constant 0 : index
    %c0_63 = arith.constant 0 : index
    %119 = vector.load %arg1[%118, %c0_62, %c0_63] : memref<8x8x512xf32, #tpu.memory_space<vmem>>, vector<1x8x512xf32>
    %120 = vector.shape_cast %119 : vector<1x8x512xf32> to vector<8x512xf32>
    %cst_64 = arith.constant dense<0.000000e+00> : vector<8x128xf32>
    %121 = tpu.matmul %116, %3, %cst_64 {dimension_numbers = #tpu.dot_dimension_numbers<[1], [0], [0], [1], [0, 0, 1, 1], [], []>} : vector<8x128xf32>, vector<128x128xf32>, vector<8x128xf32> -> vector<8x128xf32>
    %122 = tpu.concatenate %121, %121, %121, %121 in 1 : vector<8x128xf32>, vector<8x128xf32>, vector<8x128xf32>, vector<8x128xf32> -> vector<8x512xf32>
    %123 = arith.addf %120, %122 : vector<8x512xf32>
    %124 = arith.negf %123 : vector<8x512xf32>
    %125 = math.exp %124 : vector<8x512xf32>
    %cst_65 = arith.constant 1.000000e+00 : f32
    %126 = vector.broadcast %cst_65 : f32 to vector<8x512xf32>
    %127 = arith.addf %126, %125 : vector<8x512xf32>
    %128 = arith.divf %126, %127 : vector<8x512xf32>
    %129 = vector.extract_strided_slice %128 {offsets = [0, 0], sizes = [8, 128], strides = [1, 1]} : vector<8x512xf32> to vector<8x128xf32>
    %130 = vector.extract_strided_slice %128 {offsets = [0, 128], sizes = [8, 128], strides = [1, 1]} : vector<8x512xf32> to vector<8x128xf32>
    %131 = vector.extract_strided_slice %128 {offsets = [0, 256], sizes = [8, 128], strides = [1, 1]} : vector<8x512xf32> to vector<8x128xf32>
    %132 = vector.extract_strided_slice %128 {offsets = [0, 384], sizes = [8, 128], strides = [1, 1]} : vector<8x512xf32> to vector<8x128xf32>
    %133 = arith.addf %130, %117 : vector<8x128xf32>
    %134 = arith.mulf %129, %131 : vector<8x128xf32>
    %135 = arith.addf %133, %134 : vector<8x128xf32>
    %136 = math.tanh %135 : vector<8x128xf32>
    %137 = arith.addf %132, %136 : vector<8x128xf32>
    %c0_66 = arith.constant 0 : index
    %c0_67 = arith.constant 0 : index
    %138 = vector.load %arg5[%c0_66, %c0_67] : memref<8x128xf32, #tpu.memory_space<vmem>>, vector<8x128xf32>
    tpu.vector_store %arg5[%c0_66, %c0_67], %135 {strides = array<i32>} : memref<8x128xf32, #tpu.memory_space<vmem>>, vector<8x128xf32>,
    %c0_68 = arith.constant 0 : index
    %c0_69 = arith.constant 0 : index
    %139 = vector.load %arg4[%c0_68, %c0_69] : memref<8x128xf32, #tpu.memory_space<vmem>>, vector<8x128xf32>
    tpu.vector_store %arg4[%c0_68, %c0_69], %137 {strides = array<i32>} : memref<8x128xf32, #tpu.memory_space<vmem>>, vector<8x128xf32>,
    %140 = arith.index_cast %c4_i32 : i32 to index
    %c0_70 = arith.constant 0 : index
    %c0_71 = arith.constant 0 : index
    %141 = vector.load %arg3[%140, %c0_70, %c0_71] : memref<8x8x128xf32, #tpu.memory_space<vmem>>, vector<1x8x128xf32>
    %142 = vector.shape_cast %141 : vector<1x8x128xf32> to vector<8x128xf32>
    %143 = vector.shape_cast %137 : vector<8x128xf32> to vector<1x8x128xf32>
    tpu.vector_store %arg3[%140, %c0_70, %c0_71], %143 {strides = array<i32>} : memref<8x8x128xf32, #tpu.memory_space<vmem>>, vector<1x8x128xf32>,
    %c5_i32 = arith.constant 5 : i32
    %c0_72 = arith.constant 0 : index
    %c0_73 = arith.constant 0 : index
    %144 = vector.load %arg4[%c0_72, %c0_73] : memref<8x128xf32, #tpu.memory_space<vmem>>, vector<8x128xf32>
    %c0_74 = arith.constant 0 : index
    %c0_75 = arith.constant 0 : index
    %145 = vector.load %arg5[%c0_74, %c0_75] : memref<8x128xf32, #tpu.memory_space<vmem>>, vector<8x128xf32>
    %146 = arith.index_cast %c5_i32 : i32 to index
    %c0_76 = arith.constant 0 : index
    %c0_77 = arith.constant 0 : index
    %147 = vector.load %arg1[%146, %c0_76, %c0_77] : memref<8x8x512xf32, #tpu.memory_space<vmem>>, vector<1x8x512xf32>
    %148 = vector.shape_cast %147 : vector<1x8x512xf32> to vector<8x512xf32>
    %cst_78 = arith.constant dense<0.000000e+00> : vector<8x128xf32>
    %149 = tpu.matmul %144, %3, %cst_78 {dimension_numbers = #tpu.dot_dimension_numbers<[1], [0], [0], [1], [0, 0, 1, 1], [], []>} : vector<8x128xf32>, vector<128x128xf32>, vector<8x128xf32> -> vector<8x128xf32>
    %150 = tpu.concatenate %149, %149, %149, %149 in 1 : vector<8x128xf32>, vector<8x128xf32>, vector<8x128xf32>, vector<8x128xf32> -> vector<8x512xf32>
    %151 = arith.addf %148, %150 : vector<8x512xf32>
    %152 = arith.negf %151 : vector<8x512xf32>
    %153 = math.exp %152 : vector<8x512xf32>
    %cst_79 = arith.constant 1.000000e+00 : f32
    %154 = vector.broadcast %cst_79 : f32 to vector<8x512xf32>
    %155 = arith.addf %154, %153 : vector<8x512xf32>
    %156 = arith.divf %154, %155 : vector<8x512xf32>
    %157 = vector.extract_strided_slice %156 {offsets = [0, 0], sizes = [8, 128], strides = [1, 1]} : vector<8x512xf32> to vector<8x128xf32>
    %158 = vector.extract_strided_slice %156 {offsets = [0, 128], sizes = [8, 128], strides = [1, 1]} : vector<8x512xf32> to vector<8x128xf32>
    %159 = vector.extract_strided_slice %156 {offsets = [0, 256], sizes = [8, 128], strides = [1, 1]} : vector<8x512xf32> to vector<8x128xf32>
    %160 = vector.extract_strided_slice %156 {offsets = [0, 384], sizes = [8, 128], strides = [1, 1]} : vector<8x512xf32> to vector<8x128xf32>
    %161 = arith.addf %158, %145 : vector<8x128xf32>
    %162 = arith.mulf %157, %159 : vector<8x128xf32>
    %163 = arith.addf %161, %162 : vector<8x128xf32>
    %164 = math.tanh %163 : vector<8x128xf32>
    %165 = arith.addf %160, %164 : vector<8x128xf32>
    %c0_80 = arith.constant 0 : index
    %c0_81 = arith.constant 0 : index
    %166 = vector.load %arg5[%c0_80, %c0_81] : memref<8x128xf32, #tpu.memory_space<vmem>>, vector<8x128xf32>
    tpu.vector_store %arg5[%c0_80, %c0_81], %163 {strides = array<i32>} : memref<8x128xf32, #tpu.memory_space<vmem>>, vector<8x128xf32>,
    %c0_82 = arith.constant 0 : index
    %c0_83 = arith.constant 0 : index
    %167 = vector.load %arg4[%c0_82, %c0_83] : memref<8x128xf32, #tpu.memory_space<vmem>>, vector<8x128xf32>
    tpu.vector_store %arg4[%c0_82, %c0_83], %165 {strides = array<i32>} : memref<8x128xf32, #tpu.memory_space<vmem>>, vector<8x128xf32>,
    %168 = arith.index_cast %c5_i32 : i32 to index
    %c0_84 = arith.constant 0 : index
    %c0_85 = arith.constant 0 : index
    %169 = vector.load %arg3[%168, %c0_84, %c0_85] : memref<8x8x128xf32, #tpu.memory_space<vmem>>, vector<1x8x128xf32>
    %170 = vector.shape_cast %169 : vector<1x8x128xf32> to vector<8x128xf32>
    %171 = vector.shape_cast %165 : vector<8x128xf32> to vector<1x8x128xf32>
    tpu.vector_store %arg3[%168, %c0_84, %c0_85], %171 {strides = array<i32>} : memref<8x8x128xf32, #tpu.memory_space<vmem>>, vector<1x8x128xf32>,
    %c6_i32 = arith.constant 6 : i32
    %c0_86 = arith.constant 0 : index
    %c0_87 = arith.constant 0 : index
    %172 = vector.load %arg4[%c0_86, %c0_87] : memref<8x128xf32, #tpu.memory_space<vmem>>, vector<8x128xf32>
    %c0_88 = arith.constant 0 : index
    %c0_89 = arith.constant 0 : index
    %173 = vector.load %arg5[%c0_88, %c0_89] : memref<8x128xf32, #tpu.memory_space<vmem>>, vector<8x128xf32>
    %174 = arith.index_cast %c6_i32 : i32 to index
    %c0_90 = arith.constant 0 : index
    %c0_91 = arith.constant 0 : index
    %175 = vector.load %arg1[%174, %c0_90, %c0_91] : memref<8x8x512xf32, #tpu.memory_space<vmem>>, vector<1x8x512xf32>
    %176 = vector.shape_cast %175 : vector<1x8x512xf32> to vector<8x512xf32>
    %cst_92 = arith.constant dense<0.000000e+00> : vector<8x128xf32>
    %177 = tpu.matmul %172, %3, %cst_92 {dimension_numbers = #tpu.dot_dimension_numbers<[1], [0], [0], [1], [0, 0, 1, 1], [], []>} : vector<8x128xf32>, vector<128x128xf32>, vector<8x128xf32> -> vector<8x128xf32>
    %178 = tpu.concatenate %177, %177, %177, %177 in 1 : vector<8x128xf32>, vector<8x128xf32>, vector<8x128xf32>, vector<8x128xf32> -> vector<8x512xf32>
    %179 = arith.addf %176, %178 : vector<8x512xf32>
    %180 = arith.negf %179 : vector<8x512xf32>
    %181 = math.exp %180 : vector<8x512xf32>
    %cst_93 = arith.constant 1.000000e+00 : f32
    %182 = vector.broadcast %cst_93 : f32 to vector<8x512xf32>
    %183 = arith.addf %182, %181 : vector<8x512xf32>
    %184 = arith.divf %182, %183 : vector<8x512xf32>
    %185 = vector.extract_strided_slice %184 {offsets = [0, 0], sizes = [8, 128], strides = [1, 1]} : vector<8x512xf32> to vector<8x128xf32>
    %186 = vector.extract_strided_slice %184 {offsets = [0, 128], sizes = [8, 128], strides = [1, 1]} : vector<8x512xf32> to vector<8x128xf32>
    %187 = vector.extract_strided_slice %184 {offsets = [0, 256], sizes = [8, 128], strides = [1, 1]} : vector<8x512xf32> to vector<8x128xf32>
    %188 = vector.extract_strided_slice %184 {offsets = [0, 384], sizes = [8, 128], strides = [1, 1]} : vector<8x512xf32> to vector<8x128xf32>
    %189 = arith.addf %186, %173 : vector<8x128xf32>
    %190 = arith.mulf %185, %187 : vector<8x128xf32>
    %191 = arith.addf %189, %190 : vector<8x128xf32>
    %192 = math.tanh %191 : vector<8x128xf32>
    %193 = arith.addf %188, %192 : vector<8x128xf32>
    %c0_94 = arith.constant 0 : index
    %c0_95 = arith.constant 0 : index
    %194 = vector.load %arg5[%c0_94, %c0_95] : memref<8x128xf32, #tpu.memory_space<vmem>>, vector<8x128xf32>
    tpu.vector_store %arg5[%c0_94, %c0_95], %191 {strides = array<i32>} : memref<8x128xf32, #tpu.memory_space<vmem>>, vector<8x128xf32>,
    %c0_96 = arith.constant 0 : index
    %c0_97 = arith.constant 0 : index
    %195 = vector.load %arg4[%c0_96, %c0_97] : memref<8x128xf32, #tpu.memory_space<vmem>>, vector<8x128xf32>
    tpu.vector_store %arg4[%c0_96, %c0_97], %193 {strides = array<i32>} : memref<8x128xf32, #tpu.memory_space<vmem>>, vector<8x128xf32>,
    %196 = arith.index_cast %c6_i32 : i32 to index
    %c0_98 = arith.constant 0 : index
    %c0_99 = arith.constant 0 : index
    %197 = vector.load %arg3[%196, %c0_98, %c0_99] : memref<8x8x128xf32, #tpu.memory_space<vmem>>, vector<1x8x128xf32>
    %198 = vector.shape_cast %197 : vector<1x8x128xf32> to vector<8x128xf32>
    %199 = vector.shape_cast %193 : vector<8x128xf32> to vector<1x8x128xf32>
    tpu.vector_store %arg3[%196, %c0_98, %c0_99], %199 {strides = array<i32>} : memref<8x8x128xf32, #tpu.memory_space<vmem>>, vector<1x8x128xf32>,
    %c7_i32 = arith.constant 7 : i32
    %c0_100 = arith.constant 0 : index
    %c0_101 = arith.constant 0 : index
    %200 = vector.load %arg4[%c0_100, %c0_101] : memref<8x128xf32, #tpu.memory_space<vmem>>, vector<8x128xf32>
    %c0_102 = arith.constant 0 : index
    %c0_103 = arith.constant 0 : index
    %201 = vector.load %arg5[%c0_102, %c0_103] : memref<8x128xf32, #tpu.memory_space<vmem>>, vector<8x128xf32>
    %202 = arith.index_cast %c7_i32 : i32 to index
    %c0_104 = arith.constant 0 : index
    %c0_105 = arith.constant 0 : index
    %203 = vector.load %arg1[%202, %c0_104, %c0_105] : memref<8x8x512xf32, #tpu.memory_space<vmem>>, vector<1x8x512xf32>
    %204 = vector.shape_cast %203 : vector<1x8x512xf32> to vector<8x512xf32>
    %cst_106 = arith.constant dense<0.000000e+00> : vector<8x128xf32>
    %205 = tpu.matmul %200, %3, %cst_106 {dimension_numbers = #tpu.dot_dimension_numbers<[1], [0], [0], [1], [0, 0, 1, 1], [], []>} : vector<8x128xf32>, vector<128x128xf32>, vector<8x128xf32> -> vector<8x128xf32>
    %206 = tpu.concatenate %205, %205, %205, %205 in 1 : vector<8x128xf32>, vector<8x128xf32>, vector<8x128xf32>, vector<8x128xf32> -> vector<8x512xf32>
    %207 = arith.addf %204, %206 : vector<8x512xf32>
    %208 = arith.negf %207 : vector<8x512xf32>
    %209 = math.exp %208 : vector<8x512xf32>
    %cst_107 = arith.constant 1.000000e+00 : f32
    %210 = vector.broadcast %cst_107 : f32 to vector<8x512xf32>
    %211 = arith.addf %210, %209 : vector<8x512xf32>
    %212 = arith.divf %210, %211 : vector<8x512xf32>
    %213 = vector.extract_strided_slice %212 {offsets = [0, 0], sizes = [8, 128], strides = [1, 1]} : vector<8x512xf32> to vector<8x128xf32>
    %214 = vector.extract_strided_slice %212 {offsets = [0, 128], sizes = [8, 128], strides = [1, 1]} : vector<8x512xf32> to vector<8x128xf32>
    %215 = vector.extract_strided_slice %212 {offsets = [0, 256], sizes = [8, 128], strides = [1, 1]} : vector<8x512xf32> to vector<8x128xf32>
    %216 = vector.extract_strided_slice %212 {offsets = [0, 384], sizes = [8, 128], strides = [1, 1]} : vector<8x512xf32> to vector<8x128xf32>
    %217 = arith.addf %214, %201 : vector<8x128xf32>
    %218 = arith.mulf %213, %215 : vector<8x128xf32>
    %219 = arith.addf %217, %218 : vector<8x128xf32>
    %220 = math.tanh %219 : vector<8x128xf32>
    %221 = arith.addf %216, %220 : vector<8x128xf32>
    %c0_108 = arith.constant 0 : index
    %c0_109 = arith.constant 0 : index
    %222 = vector.load %arg5[%c0_108, %c0_109] : memref<8x128xf32, #tpu.memory_space<vmem>>, vector<8x128xf32>
    tpu.vector_store %arg5[%c0_108, %c0_109], %219 {strides = array<i32>} : memref<8x128xf32, #tpu.memory_space<vmem>>, vector<8x128xf32>,
    %c0_110 = arith.constant 0 : index
    %c0_111 = arith.constant 0 : index
    %223 = vector.load %arg4[%c0_110, %c0_111] : memref<8x128xf32, #tpu.memory_space<vmem>>, vector<8x128xf32>
    tpu.vector_store %arg4[%c0_110, %c0_111], %221 {strides = array<i32>} : memref<8x128xf32, #tpu.memory_space<vmem>>, vector<8x128xf32>,
    %224 = arith.index_cast %c7_i32 : i32 to index
    %c0_112 = arith.constant 0 : index
    %c0_113 = arith.constant 0 : index
    %225 = vector.load %arg3[%224, %c0_112, %c0_113] : memref<8x8x128xf32, #tpu.memory_space<vmem>>, vector<1x8x128xf32>
    %226 = vector.shape_cast %225 : vector<1x8x128xf32> to vector<8x128xf32>
    %227 = vector.shape_cast %221 : vector<8x128xf32> to vector<1x8x128xf32>
    tpu.vector_store %arg3[%224, %c0_112, %c0_113], %227 {strides = array<i32>} : memref<8x8x128xf32, #tpu.memory_space<vmem>>, vector<1x8x128xf32>,
    %c8_i32 = arith.constant 8 : i32
    return
  }
  func.func @transform_0(%arg0: i32) -> (i32, i32, i32) {
    %c0_i32 = arith.constant 0 : i32
    %c0_i32_0 = arith.constant 0 : i32
    %c0_i32_1 = arith.constant 0 : i32
    return %arg0, %c0_i32, %c0_i32_0 : i32, i32, i32
  }
  func.func @transform_1(%arg0: i32) -> (i32, i32) {
    %c0_i32 = arith.constant 0 : i32
    %c0_i32_0 = arith.constant 0 : i32
    %c0_i32_1 = arith.constant 0 : i32
    return %c0_i32, %c0_i32_0 : i32, i32
  }
  func.func @transform_2(%arg0: i32) -> (i32, i32, i32) {
    %c0_i32 = arith.constant 0 : i32
    %c0_i32_0 = arith.constant 0 : i32
    %c0_i32_1 = arith.constant 0 : i32
    return %arg0, %c0_i32, %c0_i32_0 : i32, i32, i32
  }
  func.func @transform_3(%arg0: i32) -> (i32, i32) {
    %c0_i32 = arith.constant 0 : i32
    %c0_i32_0 = arith.constant 0 : i32
    %c0_i32_1 = arith.constant 0 : i32
    return %c0_i32, %c0_i32_0 : i32, i32
  }
  func.func @transform_4(%arg0: i32) -> (i32, i32) {
    %c0_i32 = arith.constant 0 : i32
    %c0_i32_0 = arith.constant 0 : i32
    %c0_i32_1 = arith.constant 0 : i32
    return %c0_i32, %c0_i32_0 : i32, i32
  }
}

</mosaic_0001>

<llo_original>
// kernel: tile.8
$region0: #{tile.8}
  #allocation0 [shape = 's32[1]{0}', space=sflag, size = 0x4, scoped, tag = 'scoped memory for tile.8']
  %s0 = inlined_call_operand.vmem [shape: f32[128], index: 0, kind: input, shape index: {}]
  %s1 = inlined_call_operand.vmem [shape: f32[4,128], index: 1, kind: output, shape index: {}]
  // Predicated region
  $region2: #{tile.8} parent=0 // pred_check
    _
  $region3: #{tile.8} parent=0 // pred_check_branch
    %3 = sbr.rel (0) target = $region5
  $region4: #{tile.8} parent=0 // pred_region
    _
  $region5: #{tile.8} parent=0 // pred_fallthru
    _
  %v4 = vld [vmem:[%s0] ss:$0 sm:$0xff]
  %5 = vst [vmem:[%s1] sm:$0xf] %v4

// kernel: vlstm_forward.2
$region0: #{vlstm_forward.2}
  #allocation0 [shape = 'u32[]', space=smem, size = 0x4, offset = 0x4, fixed_abs, tag = 'smem constant byte address 0x4 - core index']
  #allocation1 [shape = 'u32[144,128]{1,0:T(1,128)}', space=vmem, size = 0x12000, scoped, tag = 'internal scratch']
  #allocation2 [shape = 'f32[64,256]{1,0:T(8,128)}', space=vmem, size = 0x10000, scoped, tag = 'scratch operand']
  %s0 = inlined_call_operand.vmem [shape: f32[64,32], index: 0, kind: input, shape index: {}]
  %s1 = inlined_call_operand.vmem [shape: f32[32,512], index: 1, kind: input, shape index: {}]
  %s2 = inlined_call_operand.vmem [shape: f32[1,512], index: 2, kind: input, shape index: {}]
  %s3 = inlined_call_operand.vmem [shape: f32[64,512], index: 3, kind: output, shape index: {}]
  %s4 = sld [smem:[#allocation0]]
  $region95: #{vlstm_forward.2} parent=0
    _
  %s6 = ssub.s32 1, %s4
  %s7 = scalar_select 0, %s6, %s4
  $region1: #{vlstm_forward.2} parent=0
    #allocation3 [shape = 'u8[65536]{0}', space=vmem, size = 0x10000, scoped, tag = 'input window, operand 1']
    #allocation4 [shape = 'u8[131072]{0}', space=vmem, size = 0x20000, scoped, tag = 'output window, operand 0']
    loop: start=0, step=1, limit=4
    $region2: #{vlstm_forward.2} parent=1 // loop_pre_header
      _
    $region3: #{vlstm_forward.2} parent=1 // loop_header
      %s9 = sphi 0, %s13
      %p10 = scmp.ge.s32.totalorder %s9, 4
      %s16 = sphi 0, %s35
      %s17 = sphi 0, %s31
      %s18 = sphi 0, %s27
      %s19 = sphi 0, %s16
      %s20 = sphi 0, %s17
      %s21 = sphi 0, %s18
      %s22 = sphi 0, %s19
      %s23 = sphi 0, %s20
      %s24 = sphi 0, %s21
      %s40 = sphi 0, %s42
      %s43 = sphi 0, %s40
      %s44 = sphi 0, %s43
      %s60 = sphi 0, %s44
      %s68 = sphi 0, %s70
      %s71 = sphi 0, %s68
      %s72 = sphi 0, %s71
      %s88 = sphi 0, %s72
      %s94 = sphi 0, %s96
      %s97 = sphi 0, %s94
      %s98 = sphi 0, %s97
      %s114 = sphi 0, %s98
      %s122 = sphi 0, %s124
      %s125 = sphi 0, %s122
      %s126 = sphi 0, %s125
      %s142 = sphi 0, %s126
    $region4: #{vlstm_forward.2} parent=1 // loop_header_branch
      %12 = sbr.rel (%p10) target = $region8
    $region5: #{vlstm_forward.2} parent=1 // loop_body
      %s14 = ssub.s32 %s9, 1
      %s15 = ssub.s32 %s9, 2
      %s25 = sadd.s32 1, %s18
      %p26 = scmp.ge.s32.totalorder %s25, 1
      %s27 = scalar_select %p26, 0, %s25
      %s28 = sadd.s32 1, %s17
      %s29 = scalar_select %p26, %s28, %s17
      %p30 = scmp.ge.s32.totalorder %s29, 2
      %s31 = scalar_select %p30, 0, %s29
      %s32 = sadd.s32 1, %s16
      %s33 = scalar_select %p30, %s32, %s16
      %p34 = scmp.ge.s32.totalorder %s33, 1
      %s35 = scalar_select %p34, 0, %s33
      %s36 = ssub.s32 %s16, %s35
      %s37 = ssub.s32 %s18, %s27
      %s38 = sor.u32 %s36, %s37
      %p39 = scmp.eq.s32.totalorder %s38, 0
      %s41 = sadd.s32 %s40, 1
      %s42 = scalar_select %p39, %s40, %s41
      %p45 = pneg %p39
      %p46 = scmp.eq.s32.totalorder %s9, 1
      %p47 = por %p45, %p46
      %p48 = scmp.ne.s32.totalorder %s40, %s43
      %p49 = scmp.eq.s32.totalorder %s9, 0
      %p50 = por %p48, %p49
      %p51 = scmp.ne.s32.totalorder %s40, %s43
      %p52 = scmp.eq.s32.totalorder %s14, 1
      %p53 = por %p51, %p52
      %p54 = scmp.ne.s32.totalorder %s43, %s44
      %p55 = scmp.eq.s32.totalorder %s14, 0
      %p56 = por %p54, %p55
      %p57 = scmp.ne.s32.totalorder %s43, %s44
      %p58 = scmp.eq.s32.totalorder %s15, 1
      %p59 = por %p57, %p58
      %p61 = scmp.ne.s32.totalorder %s44, %s60
      %p62 = scmp.eq.s32.totalorder %s15, 0
      %p63 = por %p61, %p62
      %s64 = ssub.s32 %s18, %s27
      %s65 = ssub.s32 %s17, %s31
      %s66 = sor.u32 %s64, %s65
      %p67 = scmp.eq.s32.totalorder %s66, 0
      %s69 = sadd.s32 %s68, 1
      %s70 = scalar_select %p67, %s68, %s69
      %p73 = pneg %p67
      %p74 = scmp.eq.s32.totalorder %s9, 1
      %p75 = por %p73, %p74
      %p76 = scmp.ne.s32.totalorder %s68, %s71
      %p77 = scmp.eq.s32.totalorder %s9, 0
      %p78 = por %p76, %p77
      %p79 = scmp.ne.s32.totalorder %s68, %s71
      %p80 = scmp.eq.s32.totalorder %s14, 1
      %p81 = por %p79, %p80
      %p82 = scmp.ne.s32.totalorder %s71, %s72
      %p83 = scmp.eq.s32.totalorder %s14, 0
      %p84 = por %p82, %p83
      %p85 = scmp.ne.s32.totalorder %s71, %s72
      %p86 = scmp.eq.s32.totalorder %s15, 1
      %p87 = por %p85, %p86
      %p89 = scmp.ne.s32.totalorder %s72, %s88
      %p90 = scmp.eq.s32.totalorder %s15, 0
      %p91 = por %p89, %p90
      %s92 = ssub.s32 %s17, %s31
      %p93 = scmp.eq.s32.totalorder %s92, 0
      %s95 = sadd.s32 %s94, 1
      %s96 = scalar_select %p93, %s94, %s95
      %p99 = pneg %p93
      %p100 = scmp.eq.s32.totalorder %s9, 1
      %p101 = por %p99, %p100
      %p102 = scmp.ne.s32.totalorder %s94, %s97
      %p103 = scmp.eq.s32.totalorder %s9, 0
      %p104 = por %p102, %p103
      %p105 = scmp.ne.s32.totalorder %s94, %s97
      %p106 = scmp.eq.s32.totalorder %s14, 1
      %p107 = por %p105, %p106
      %p108 = scmp.ne.s32.totalorder %s97, %s98
      %p109 = scmp.eq.s32.totalorder %s14, 0
      %p110 = por %p108, %p109
      %p111 = scmp.ne.s32.totalorder %s97, %s98
      %p112 = scmp.eq.s32.totalorder %s15, 1
      %p113 = por %p111, %p112
      %p115 = scmp.ne.s32.totalorder %s98, %s114
      %p116 = scmp.eq.s32.totalorder %s15, 0
      %p117 = por %p115, %p116
      %s118 = ssub.s32 %s16, %s35
      %s119 = ssub.s32 %s17, %s31
      %s120 = sor.u32 %s118, %s119
      %p121 = scmp.eq.s32.totalorder %s120, 0
      %s123 = sadd.s32 %s122, 1
      %s124 = scalar_select %p121, %s122, %s123
      %p127 = pneg %p121
      %p128 = scmp.eq.s32.totalorder %s9, 1
      %p129 = por %p127, %p128
      %p130 = scmp.ne.s32.totalorder %s122, %s125
      %p131 = scmp.eq.s32.totalorder %s9, 0
      %p132 = por %p130, %p131
      %p133 = scmp.ne.s32.totalorder %s122, %s125
      %p134 = scmp.eq.s32.totalorder %s14, 1
      %p135 = por %p133, %p134
      %p136 = scmp.ne.s32.totalorder %s125, %s126
      %p137 = scmp.eq.s32.totalorder %s14, 0
      %p138 = por %p136, %p137
      %p139 = scmp.ne.s32.totalorder %s125, %s126
      %p140 = scmp.eq.s32.totalorder %s15, 1
      %p141 = por %p139, %p140
      %p143 = scmp.ne.s32.totalorder %s126, %s142
      %p144 = scmp.eq.s32.totalorder %s15, 0
      %p145 = por %p143, %p144
      %p146 = scmp.le.s32.totalorder 1, %s9
      %p147 = scmp.lt.s32.totalorder %s9, 3
      %p148 = pnand %p146, %p147
      %p149 = pneg %p148
      // Predicated region
      $region9: #{vlstm_forward.2} parent=5 // pred_check
        _
      $region10: #{vlstm_forward.2} parent=5 // pred_check_branch
        %151 = sbr.rel (%p148) target = $region12
      $region11: #{vlstm_forward.2} parent=5 // pred_region
        %s152 = ssub.s32 %s9, 1
        // Predicated region
        $region13: #{vlstm_forward.2} parent=11 // pred_check
          %p153 = pneg %p56
        $region14: #{vlstm_forward.2} parent=11 // pred_check_branch
          %155 = sbr.rel (%p153) target = $region16
        $region15: #{vlstm_forward.2} parent=11 // pred_region
          %s156 = smul.u32 8, %s19
          %p157 = scmp.lt.s32.totalorder %s156, 7
          %s158 = scalar_select %p157, %s156, 7
          %p159 = scmp.lt.s32.totalorder %s21, 0
          %s160 = scalar_select %p159, %s21, 0
          %s161 = sadd.s32 %s160, %s158
          %s162 = smul.addr %s161, 8
          %s163 = scalar_lea.vmem %s0, %s162
          %s164 = smul.u32 8, %s19
        $region16: #{vlstm_forward.2} parent=11 // pred_fallthru
          _
      $region12: #{vlstm_forward.2} parent=5 // pred_fallthru
        _
      %p165 = scmp.lt.s32.totalorder %s9, 2
      // Predicated region
      $region17: #{vlstm_forward.2} parent=5 // pred_check
        %p166 = pneg %p165
      $region18: #{vlstm_forward.2} parent=5 // pred_check_branch
        %168 = sbr.rel (%p166) target = $region20
      $region19: #{vlstm_forward.2} parent=5 // pred_region
        // Predicated region
        $region21: #{vlstm_forward.2} parent=19 // pred_check
          %p169 = pneg %p78
        $region22: #{vlstm_forward.2} parent=19 // pred_check_branch
          %171 = sbr.rel (%p169) target = $region24
        $region23: #{vlstm_forward.2} parent=19 // pred_region
          %s172 = sand.u32 %s68, 1
          %s173 = sand.u32 %s68, 1
          %s174 = smul.addr %s173, 64
          %s175 = scalar_lea.vmem [#allocation3], %s174
          %s176 = smul.u32 4, %s18
          %s177 = smul.u32 2, %s17
          %s178 = smul.addr %s176, 4
          %s179 = sadd.s32 %s177, %s178
          %s180 = smul.addr %s179, 8
          %s181 = scalar_lea.vmem %s1, %s180
          // Predicated region
          $region25: #{vlstm_forward.2} parent=23 // pred_check
            _
          $region26: #{vlstm_forward.2} parent=23 // pred_check_branch
            %183 = sbr.rel (0) target = $region28
          $region27: #{vlstm_forward.2} parent=23 // pred_region
            // Predicated region
            $region29: #{vlstm_forward.2} parent=27 // pred_check
              _
            $region30: #{vlstm_forward.2} parent=27 // pred_check_branch
              %185 = sbr.rel (0) target = $region32
            $region31: #{vlstm_forward.2} parent=27 // pred_region
              loop: start=0, step=1, limit=1
              $region33: #{vlstm_forward.2} parent=31 // loop_pre_header
                _
              $region34: #{vlstm_forward.2} parent=31 // loop_header
                %s187 = sphi 0, %s191
                %p188 = scmp.ge.s32.totalorder %s187, 1
                %s192 = sphi %s181, %s181
                %s193 = sphi %s175, %s175
              $region35: #{vlstm_forward.2} parent=31 // loop_header_branch
                %190 = sbr.rel (%p188) target = $region39
              $region36: #{vlstm_forward.2} parent=31 // loop_body
                %v194 = vld [vmem:[%s192] sm:$0xff]
                %195 = vst [vmem:[%s193] sm:$0xff] %v194
                %v196 = vld [vmem:[%s192 + $0x8] sm:$0xff]
                %197 = vst [vmem:[%s193 + $0x8] sm:$0xff] %v196
                %v198 = vld [vmem:[%s192 + $0x20] sm:$0xff]
                %199 = vst [vmem:[%s193 + $0x10] sm:$0xff] %v198
                %v200 = vld [vmem:[%s192 + $0x28] sm:$0xff]
                %201 = vst [vmem:[%s193 + $0x18] sm:$0xff] %v200
                %v202 = vld [vmem:[%s192 + $0x40] sm:$0xff]
                %203 = vst [vmem:[%s193 + $0x20] sm:$0xff] %v202
                %v204 = vld [vmem:[%s192 + $0x48] sm:$0xff]
                %205 = vst [vmem:[%s193 + $0x28] sm:$0xff] %v204
                %v206 = vld [vmem:[%s192 + $0x60] sm:$0xff]
                %207 = vst [vmem:[%s193 + $0x30] sm:$0xff] %v206
                %v208 = vld [vmem:[%s192 + $0x68] sm:$0xff]
                %209 = vst [vmem:[%s193 + $0x38] sm:$0xff] %v208
              $region37: #{vlstm_forward.2} parent=31 // loop_footer
                %s191 = sadd.s32 1, %s187
              $region38: #{vlstm_forward.2} parent=31 // loop_footer_branch
                %186 = sbr.rel target = $region34
              $region39: #{vlstm_forward.2} parent=31 // loop_exit
                _
            $region32: #{vlstm_forward.2} parent=27 // pred_fallthru
              _
            // Predicated region
            $region40: #{vlstm_forward.2} parent=27 // pred_check
              _
            $region41: #{vlstm_forward.2} parent=27 // pred_check_branch
              %211 = sbr.rel target = $region43
            $region42: #{vlstm_forward.2} parent=27 // pred_region
              _
            $region43: #{vlstm_forward.2} parent=27 // pred_fallthru
              _
          $region28: #{vlstm_forward.2} parent=23 // pred_fallthru
            _
          %212 = vnop
        $region24: #{vlstm_forward.2} parent=19 // pred_fallthru
          _
        // Predicated region
        $region44: #{vlstm_forward.2} parent=19 // pred_check
          %p213 = pneg %p104
        $region45: #{vlstm_forward.2} parent=19 // pred_check_branch
          %215 = sbr.rel (%p213) target = $region47
        $region46: #{vlstm_forward.2} parent=19 // pred_region
          %s216 = smul.u32 2, %s17
          %p217 = scmp.lt.s32.totalorder %s216, 3
          %s218 = scalar_select %p217, %s216, 3
          %s219 = scalar_lea.vmem %s2, %s218
          %s220 = smul.u32 2, %s17
        $region47: #{vlstm_forward.2} parent=19 // pred_fallthru
          _
      $region20: #{vlstm_forward.2} parent=5 // pred_fallthru
        _
      %p221 = scmp.le.s32.totalorder 1, %s9
      %p222 = scmp.lt.s32.totalorder %s9, 3
      %p223 = pnand %p221, %p222
      %p224 = pneg %p223
      // Predicated region
      $region48: #{vlstm_forward.2} parent=5 // pred_check
        _
      $region49: #{vlstm_forward.2} parent=5 // pred_check_branch
        %226 = sbr.rel (%p223) target = $region51
      $region50: #{vlstm_forward.2} parent=5 // pred_region
        %s227 = ssub.s32 %s9, 1
        %s228 = sand.u32 %s71, 1
        %s229 = sand.u32 %s71, 1
        %s230 = smul.addr %s229, 64
        %s231 = scalar_lea.vmem [#allocation3], %s230
        // Predicated region
        $region52: #{vlstm_forward.2} parent=50 // pred_check
          %p232 = pneg %p84
        $region53: #{vlstm_forward.2} parent=50 // pred_check_branch
          %234 = sbr.rel (%p232) target = $region55
        $region54: #{vlstm_forward.2} parent=50 // pred_region
          _
        $region55: #{vlstm_forward.2} parent=50 // pred_fallthru
          _
        %s235 = smul.u32 8, %s19
        %p236 = scmp.lt.s32.totalorder %s235, 7
        %s237 = scalar_select %p236, %s235, 7
        %p238 = scmp.lt.s32.totalorder %s21, 0
        %s239 = scalar_select %p238, %s21, 0
        %s240 = sadd.s32 %s239, %s237
        %s241 = smul.addr %s240, 8
        %s242 = scalar_lea.vmem %s0, %s241
        %p243 = pneg %p56
        %p244 = pneg %p53
        %s245 = sand.u32 %s71, 1
        %s246 = sand.u32 %s71, 1
        %s247 = smul.addr %s246, 64
        %s248 = scalar_lea.vmem [#allocation3], %s247
        %p249 = pneg %p84
        %p250 = pneg %p81
        %s251 = smul.u32 2, %s20
        %p252 = scmp.lt.s32.totalorder %s251, 3
        %s253 = scalar_select %p252, %s251, 3
        %s254 = scalar_lea.vmem %s2, %s253
        %p255 = pneg %p110
        %p256 = pneg %p107
        %p257 = pneg %p138
        %p258 = pneg %p135
        %s259 = sand.u32 %s125, 1
        %s260 = sand.u32 %s125, 1
        %s261 = smul.addr %s260, 128
        %s262 = scalar_lea.vmem [#allocation4], %s261
        %s263 = smul.u32 8, %s19
        %p264 = scmp.lt.s32.totalorder %s263, 7
        %s265 = scalar_select %p264, %s263, 7
        %p266 = scmp.lt.s32.totalorder %s21, 0
        %s267 = scalar_select %p266, %s21, 0
        %s268 = sadd.s32 %s267, %s265
        %s269 = smul.addr %s268, 8
        %s270 = scalar_lea.vmem %s0, %s269
        %s271 = smul.u32 8, %s19
        %s272 = smul.u32 4, %s21
        %s273 = smul.u32 2, %s20
        %s274 = smul.u32 2, %s20
        %p275 = scmp.lt.s32.totalorder %s274, 3
        %s276 = scalar_select %p275, %s274, 3
        %s277 = scalar_lea.vmem %s2, %s276
        %s278 = smul.u32 2, %s20
        %s279 = smul.u32 8, %s19
        %s280 = smul.u32 2, %s20
        %p281 = scmp.eq.s32.totalorder %s21, 0
        // Predicated region
        $region56: #{vlstm_forward.2} parent=50 // pred_check
          %p282 = pneg %p281
        $region57: #{vlstm_forward.2} parent=50 // pred_check_branch
          %284 = sbr.rel (%p282) target = $region59
        $region58: #{vlstm_forward.2} parent=50 // pred_region
          %285 = vst [vmem:[#allocation2] sm:$0xff] 0.0
          %286 = vst [vmem:[#allocation2 + $0x8] sm:$0xff] 0.0
          %287 = vst [vmem:[#allocation2 + $0x10] sm:$0xff] 0.0
          %288 = vst [vmem:[#allocation2 + $0x18] sm:$0xff] 0.0
          %289 = vst [vmem:[#allocation2 + $0x20] sm:$0xff] 0.0
          %290 = vst [vmem:[#allocation2 + $0x28] sm:$0xff] 0.0
          %291 = vst [vmem:[#allocation2 + $0x30] sm:$0xff] 0.0
          %292 = vst [vmem:[#allocation2 + $0x38] sm:$0xff] 0.0
          %293 = vst [vmem:[#allocation2 + $0x40] sm:$0xff] 0.0
          %294 = vst [vmem:[#allocation2 + $0x48] sm:$0xff] 0.0
          %295 = vst [vmem:[#allocation2 + $0x50] sm:$0xff] 0.0
          %296 = vst [vmem:[#allocation2 + $0x58] sm:$0xff] 0.0
          %297 = vst [vmem:[#allocation2 + $0x60] sm:$0xff] 0.0
          %298 = vst [vmem:[#allocation2 + $0x68] sm:$0xff] 0.0
          %299 = vst [vmem:[#allocation2 + $0x70] sm:$0xff] 0.0
          %300 = vst [vmem:[#allocation2 + $0x78] sm:$0xff] 0.0
        $region59: #{vlstm_forward.2} parent=50 // pred_fallthru
          _
        %v301 = vld [vmem:[#allocation2] sm:$0xff]
        %v302 = vld [vmem:[#allocation2 + $0x8] sm:$0xff]
        %v303 = vld [vmem:[#allocation2 + $0x10] sm:$0xff]
        %v304 = vld [vmem:[#allocation2 + $0x18] sm:$0xff]
        %v305 = vld [vmem:[#allocation2 + $0x20] sm:$0xff]
        %v306 = vld [vmem:[#allocation2 + $0x28] sm:$0xff]
        %v307 = vld [vmem:[#allocation2 + $0x30] sm:$0xff]
        %v308 = vld [vmem:[#allocation2 + $0x38] sm:$0xff]
        %v309 = vld [vmem:[#allocation2 + $0x40] sm:$0xff]
        %v310 = vld [vmem:[#allocation2 + $0x48] sm:$0xff]
        %v311 = vld [vmem:[#allocation2 + $0x50] sm:$0xff]
        %v312 = vld [vmem:[#allocation2 + $0x58] sm:$0xff]
        %v313 = vld [vmem:[#allocation2 + $0x60] sm:$0xff]
        %v314 = vld [vmem:[#allocation2 + $0x68] sm:$0xff]
        %v315 = vld [vmem:[#allocation2 + $0x70] sm:$0xff]
        %v316 = vld [vmem:[#allocation2 + $0x78] sm:$0xff]
        %v317 = vld [vmem:[%s270] sm:$0xff]
        %v318 = vld [vmem:[%s270 + $0x8] sm:$0xff]
        %v319 = vld [vmem:[%s270 + $0x10] sm:$0xff]
        %v320 = vld [vmem:[%s270 + $0x18] sm:$0xff]
        %v321 = vld [vmem:[%s270 + $0x20] sm:$0xff]
        %v322 = vld [vmem:[%s270 + $0x28] sm:$0xff]
        %v323 = vld [vmem:[%s270 + $0x30] sm:$0xff]
        %v324 = vld [vmem:[%s270 + $0x38] sm:$0xff]
        %v325 = vld [vmem:[%s231] sm:$0xff]
        %v326 = vld [vmem:[%s231 + $0x8] sm:$0xff]
        %v327 = vld [vmem:[%s231 + $0x10] sm:$0xff]
        %v328 = vld [vmem:[%s231 + $0x18] sm:$0xff]
        %v329 = vld [vmem:[%s231 + $0x20] sm:$0xff]
        %v330 = vld [vmem:[%s231 + $0x28] sm:$0xff]
        %v331 = vld [vmem:[%s231 + $0x30] sm:$0xff]
        %v332 = vld [vmem:[%s231 + $0x38] sm:$0xff]
        %vm333 = vcmask 261120
        %v335 = vsel %vm333, %v317, 0
        %v338 = vsel %vm333, %v318, 0
        %v341 = vsel %vm333, %v319, 0
        %v344 = vsel %vm333, %v320, 0
        %v347 = vsel %vm333, %v321, 0
        %v350 = vsel %vm333, %v322, 0
        %v353 = vsel %vm333, %v323, 0
        %v356 = vsel %vm333, %v324, 0
        %358 = vmatprep.subr.mxu0 %v326
        %359 = vmatpush1.msra.mxu0 %v325
        %360 = vmatprep.subr.mxu0 %v328
        %361 = vmatpush1.msra.mxu0 %v327
        %362 = vmatprep.subr.mxu0 %v330
        %363 = vmatpush1.msra.mxu0 %v329
        %364 = vmatprep.subr.mxu0 %v332
        %365 = vmatpush1.msra.mxu0 %v331
        %366 = vmatprep.subr.mxu0 0.0
        %367 = vmatpush1.msra.mxu0 0.0
        %368 = vmatprep.subr.mxu0 0.0
        %369 = vmatpush1.msra.mxu0 0.0
        %370 = vmatprep.subr.mxu0 0.0
        %371 = vmatpush1.msra.mxu0 0.0
        %372 = vmatprep.subr.mxu0 0.0
        %373 = vmatpush1.msra.mxu0 0.0
        %374 = vmatprep.subr.mxu0 0.0
        %375 = vmatpush1.msra.mxu0 0.0
        %376 = vmatprep.subr.mxu0 0.0
        %377 = vmatpush1.msra.mxu0 0.0
        %378 = vmatprep.subr.mxu0 0.0
        %379 = vmatpush1.msra.mxu0 0.0
        %380 = vmatprep.subr.mxu0 0.0
        %381 = vmatpush1.msra.mxu0 0.0
        %382 = vmatprep.subr.mxu0 0.0
        %383 = vmatpush1.msra.mxu0 0.0
        %384 = vmatprep.subr.mxu0 0.0
        %385 = vmatpush1.msra.mxu0 0.0
        %386 = vmatprep.subr.mxu0 0.0
        %387 = vmatpush1.msra.mxu0 0.0
        %388 = vmatprep.subr.mxu0 0.0
        %389 = vmatpush1.msra.mxu0 0.0
        %390 = vmatprep.subr.mxu0 0.0
        %391 = vmatpush1.msra.mxu0 0.0
        %392 = vmatprep.subr.mxu0 0.0
        %393 = vmatpush1.msra.mxu0 0.0
        %394 = vmatprep.subr.mxu0 0.0
        %395 = vmatpush1.msra.mxu0 0.0
        %396 = vmatprep.subr.mxu0 0.0
        %397 = vmatpush1.msra.mxu0 0.0
        %398 = vmatprep.subr.mxu0 0.0
        %399 = vmatpush1.msra.mxu0 0.0
        %400 = vmatprep.subr.mxu0 0.0
        %401 = vmatpush1.msra.mxu0 0.0
        %402 = vmatprep.subr.mxu0 0.0
        %403 = vmatpush1.msra.mxu0 0.0
        %404 = vmatprep.subr.mxu0 0.0
        %405 = vmatpush1.msra.mxu0 0.0
        %406 = vmatprep.subr.mxu0 0.0
        %407 = vmatpush1.msra.mxu0 0.0
        %408 = vmatprep.subr.mxu0 0.0
        %409 = vmatpush1.msra.mxu0 0.0
        %410 = vmatprep.subr.mxu0 0.0
        %411 = vmatpush1.msra.mxu0 0.0
        %412 = vmatprep.subr.mxu0 0.0
        %413 = vmatpush1.msra.mxu0 0.0
        %414 = vmatprep.subr.mxu0 0.0
        %415 = vmatpush1.msra.mxu0 0.0
        %416 = vmatprep.subr.mxu0 0.0
        %417 = vmatpush1.msra.mxu0 0.0
        %418 = vmatprep.subr.mxu0 0.0
        %419 = vmatpush1.msra.mxu0 0.0
        %420 = vmatprep.subr.mxu0 0.0
        %421 = vmatpush1.msra.mxu0 0.0
        %422 = vmatprep.mubr.f32.mxu0 0.0
        %423 = vmatmul.mubr.f32.gmra.mrb[0].mxu0 %v335
        %v424 = vpop.f32.mrb[0].mxu0
        %v425 = vadd.f32 0.0, %v424
        %v426 = vpop.f32.mrb[0].mxu0
        %v427 = vadd.f32 0.0, %v426
        %428 = vmatprep.mubr.f32.mxu0 0.0
        %429 = vmatmul.mubr.f32.gmra.mrb[0].mxu0 %v338
        %v430 = vpop.f32.mrb[0].mxu0
        %v431 = vadd.f32 0.0, %v430
        %v432 = vpop.f32.mrb[0].mxu0
        %v433 = vadd.f32 0.0, %v432
        %434 = vmatprep.mubr.f32.mxu0 0.0
        %435 = vmatmul.mubr.f32.gmra.mrb[0].mxu0 %v341
        %v436 = vpop.f32.mrb[0].mxu0
        %v437 = vadd.f32 0.0, %v436
        %v438 = vpop.f32.mrb[0].mxu0
        %v439 = vadd.f32 0.0, %v438
        %440 = vmatprep.mubr.f32.mxu0 0.0
        %441 = vmatmul.mubr.f32.gmra.mrb[0].mxu0 %v344
        %v442 = vpop.f32.mrb[0].mxu0
        %v443 = vadd.f32 0.0, %v442
        %v444 = vpop.f32.mrb[0].mxu0
        %v445 = vadd.f32 0.0, %v444
        %446 = vmatprep.mubr.f32.mxu0 0.0
        %447 = vmatmul.mubr.f32.gmra.mrb[0].mxu0 %v347
        %v448 = vpop.f32.mrb[0].mxu0
        %v449 = vadd.f32 0.0, %v448
        %v450 = vpop.f32.mrb[0].mxu0
        %v451 = vadd.f32 0.0, %v450
        %452 = vmatprep.mubr.f32.mxu0 0.0
        %453 = vmatmul.mubr.f32.gmra.mrb[0].mxu0 %v350
        %v454 = vpop.f32.mrb[0].mxu0
        %v455 = vadd.f32 0.0, %v454
        %v456 = vpop.f32.mrb[0].mxu0
        %v457 = vadd.f32 0.0, %v456
        %458 = vmatprep.mubr.f32.mxu0 0.0
        %459 = vmatmul.mubr.f32.gmra.mrb[0].mxu0 %v353
        %v460 = vpop.f32.mrb[0].mxu0
        %v461 = vadd.f32 0.0, %v460
        %v462 = vpop.f32.mrb[0].mxu0
        %v463 = vadd.f32 0.0, %v462
        %464 = vmatprep.mubr.f32.mxu0 0.0
        %465 = vmatmul.mubr.f32.gmra.mrb[0].mxu0 %v356
        %v466 = vpop.f32.mrb[0].mxu0
        %v467 = vadd.f32 0.0, %v466
        %v468 = vpop.f32.mrb[0].mxu0
        %v469 = vadd.f32 0.0, %v468
        %470 = vdwg.mxu0
        %v471 = vadd.f32 %v301, %v425
        %v472 = vadd.f32 %v302, %v427
        %v473 = vadd.f32 %v303, %v431
        %v474 = vadd.f32 %v304, %v433
        %v475 = vadd.f32 %v305, %v437
        %v476 = vadd.f32 %v306, %v439
        %v477 = vadd.f32 %v307, %v443
        %v478 = vadd.f32 %v308, %v445
        %v479 = vadd.f32 %v309, %v449
        %v480 = vadd.f32 %v310, %v451
        %v481 = vadd.f32 %v311, %v455
        %v482 = vadd.f32 %v312, %v457
        %v483 = vadd.f32 %v313, %v461
        %v484 = vadd.f32 %v314, %v463
        %v485 = vadd.f32 %v315, %v467
        %v486 = vadd.f32 %v316, %v469
        %487 = vst [vmem:[#allocation2] sm:$0xff] %v471
        %488 = vst [vmem:[#allocation2 + $0x8] sm:$0xff] %v472
        %489 = vst [vmem:[#allocation2 + $0x10] sm:$0xff] %v473
        %490 = vst [vmem:[#allocation2 + $0x18] sm:$0xff] %v474
        %491 = vst [vmem:[#allocation2 + $0x20] sm:$0xff] %v475
        %492 = vst [vmem:[#allocation2 + $0x28] sm:$0xff] %v476
        %493 = vst [vmem:[#allocation2 + $0x30] sm:$0xff] %v477
        %494 = vst [vmem:[#allocation2 + $0x38] sm:$0xff] %v478
        %495 = vst [vmem:[#allocation2 + $0x40] sm:$0xff] %v479
        %496 = vst [vmem:[#allocation2 + $0x48] sm:$0xff] %v480
        %497 = vst [vmem:[#allocation2 + $0x50] sm:$0xff] %v481
        %498 = vst [vmem:[#allocation2 + $0x58] sm:$0xff] %v482
        %499 = vst [vmem:[#allocation2 + $0x60] sm:$0xff] %v483
        %500 = vst [vmem:[#allocation2 + $0x68] sm:$0xff] %v484
        %501 = vst [vmem:[#allocation2 + $0x70] sm:$0xff] %v485
        %502 = vst [vmem:[#allocation2 + $0x78] sm:$0xff] %v486
        // Predicated region
        $region60: #{vlstm_forward.2} parent=50 // pred_check
          %p503 = pneg %p281
        $region61: #{vlstm_forward.2} parent=50 // pred_check_branch
          %505 = sbr.rel (%p503) target = $region63
        $region62: #{vlstm_forward.2} parent=50 // pred_region
          %v506 = vld [vmem:[#allocation2] sm:$0xff]
          %v507 = vld [vmem:[#allocation2 + $0x8] sm:$0xff]
          %v508 = vld [vmem:[#allocation2 + $0x10] sm:$0xff]
          %v509 = vld [vmem:[#allocation2 + $0x18] sm:$0xff]
          %v510 = vld [vmem:[#allocation2 + $0x20] sm:$0xff]
          %v511 = vld [vmem:[#allocation2 + $0x28] sm:$0xff]
          %v512 = vld [vmem:[#allocation2 + $0x30] sm:$0xff]
          %v513 = vld [vmem:[#allocation2 + $0x38] sm:$0xff]
          %v514 = vld [vmem:[#allocation2 + $0x40] sm:$0xff]
          %v515 = vld [vmem:[#allocation2 + $0x48] sm:$0xff]
          %v516 = vld [vmem:[#allocation2 + $0x50] sm:$0xff]
          %v517 = vld [vmem:[#allocation2 + $0x58] sm:$0xff]
          %v518 = vld [vmem:[#allocation2 + $0x60] sm:$0xff]
          %v519 = vld [vmem:[#allocation2 + $0x68] sm:$0xff]
          %v520 = vld [vmem:[#allocation2 + $0x70] sm:$0xff]
          %v521 = vld [vmem:[#allocation2 + $0x78] sm:$0xff]
          %v522 = vld [vmem:[%s277] sm:$0x3]
          %v524 = vlaneseq
          %v525 = vshrl.u32 %v524, 7
          %v526 = vsub.s32 0, %v525
          %v527 = vrot.slane %v522, %v526
          %v528 = vlaneseq
          %v529 = vshrl.u32 %v528, 7
          %v530 = vsub.s32 1, %v529
          %v531 = vrot.slane %v522, %v530
          %v534 = vadd.f32 %v506, %v527
          %v535 = vadd.f32 %v507, %v531
          %v536 = vadd.f32 %v508, %v527
          %v537 = vadd.f32 %v509, %v531
          %v538 = vadd.f32 %v510, %v527
          %v539 = vadd.f32 %v511, %v531
          %v540 = vadd.f32 %v512, %v527
          %v541 = vadd.f32 %v513, %v531
          %v542 = vadd.f32 %v514, %v527
          %v543 = vadd.f32 %v515, %v531
          %v544 = vadd.f32 %v516, %v527
          %v545 = vadd.f32 %v517, %v531
          %v546 = vadd.f32 %v518, %v527
          %v547 = vadd.f32 %v519, %v531
          %v548 = vadd.f32 %v520, %v527
          %v549 = vadd.f32 %v521, %v531
          %550 = vst [vmem:[%s262] sm:$0xff] %v534
          %551 = vst [vmem:[%s262 + $0x8] sm:$0xff] %v535
          %552 = vst [vmem:[%s262 + $0x10] sm:$0xff] %v536
          %553 = vst [vmem:[%s262 + $0x18] sm:$0xff] %v537
          %554 = vst [vmem:[%s262 + $0x20] sm:$0xff] %v538
          %555 = vst [vmem:[%s262 + $0x28] sm:$0xff] %v539
          %556 = vst [vmem:[%s262 + $0x30] sm:$0xff] %v540
          %557 = vst [vmem:[%s262 + $0x38] sm:$0xff] %v541
          %558 = vst [vmem:[%s262 + $0x40] sm:$0xff] %v542
          %559 = vst [vmem:[%s262 + $0x48] sm:$0xff] %v543
          %560 = vst [vmem:[%s262 + $0x50] sm:$0xff] %v544
          %561 = vst [vmem:[%s262 + $0x58] sm:$0xff] %v545
          %562 = vst [vmem:[%s262 + $0x60] sm:$0xff] %v546
          %563 = vst [vmem:[%s262 + $0x68] sm:$0xff] %v547
          %564 = vst [vmem:[%s262 + $0x70] sm:$0xff] %v548
          %565 = vst [vmem:[%s262 + $0x78] sm:$0xff] %v549
        $region63: #{vlstm_forward.2} parent=50 // pred_fallthru
          _
        %s566 = sand.u32 %s125, 1
        %s567 = sand.u32 %s125, 1
        %s568 = smul.addr %s567, 128
        %s569 = scalar_lea.vmem [#allocation4], %s568
        // Predicated region
        $region64: #{vlstm_forward.2} parent=50 // pred_check
          %p570 = pneg %p135
        $region65: #{vlstm_forward.2} parent=50 // pred_check_branch
          %572 = sbr.rel (%p570) target = $region67
        $region66: #{vlstm_forward.2} parent=50 // pred_region
          %s573 = smul.u32 8, %s19
          %s574 = smul.u32 2, %s20
          %s575 = smul.addr %s573, 4
          %s576 = sadd.s32 %s574, %s575
          %s577 = smul.addr %s576, 8
          %s578 = scalar_lea.vmem %s3, %s577
          // Predicated region
          $region68: #{vlstm_forward.2} parent=66 // pred_check
            _
          $region69: #{vlstm_forward.2} parent=66 // pred_check_branch
            %580 = sbr.rel (0) target = $region71
          $region70: #{vlstm_forward.2} parent=66 // pred_region
            // Predicated region
            $region72: #{vlstm_forward.2} parent=70 // pred_check
              _
            $region73: #{vlstm_forward.2} parent=70 // pred_check_branch
              %582 = sbr.rel (0) target = $region75
            $region74: #{vlstm_forward.2} parent=70 // pred_region
              loop: start=0, step=1, limit=1
              $region76: #{vlstm_forward.2} parent=74 // loop_pre_header
                _
              $region77: #{vlstm_forward.2} parent=74 // loop_header
                %s584 = sphi 0, %s588
                %p585 = scmp.ge.s32.totalorder %s584, 1
                %s589 = sphi %s569, %s569
                %s590 = sphi %s578, %s578
              $region78: #{vlstm_forward.2} parent=74 // loop_header_branch
                %587 = sbr.rel (%p585) target = $region82
              $region79: #{vlstm_forward.2} parent=74 // loop_body
                %v591 = vld [vmem:[%s589] sm:$0xff]
                %592 = vst [vmem:[%s590] sm:$0xff] %v591
                %v593 = vld [vmem:[%s589 + $0x8] sm:$0xff]
                %594 = vst [vmem:[%s590 + $0x8] sm:$0xff] %v593
                %v595 = vld [vmem:[%s589 + $0x10] sm:$0xff]
                %596 = vst [vmem:[%s590 + $0x20] sm:$0xff] %v595
                %v597 = vld [vmem:[%s589 + $0x18] sm:$0xff]
                %598 = vst [vmem:[%s590 + $0x28] sm:$0xff] %v597
                %v599 = vld [vmem:[%s589 + $0x20] sm:$0xff]
                %600 = vst [vmem:[%s590 + $0x40] sm:$0xff] %v599
                %v601 = vld [vmem:[%s589 + $0x28] sm:$0xff]
                %602 = vst [vmem:[%s590 + $0x48] sm:$0xff] %v601
                %v603 = vld [vmem:[%s589 + $0x30] sm:$0xff]
                %604 = vst [vmem:[%s590 + $0x60] sm:$0xff] %v603
                %v605 = vld [vmem:[%s589 + $0x38] sm:$0xff]
                %606 = vst [vmem:[%s590 + $0x68] sm:$0xff] %v605
                %v607 = vld [vmem:[%s589 + $0x40] sm:$0xff]
                %608 = vst [vmem:[%s590 + $0x80] sm:$0xff] %v607
                %v609 = vld [vmem:[%s589 + $0x48] sm:$0xff]
                %610 = vst [vmem:[%s590 + $0x88] sm:$0xff] %v609
                %v611 = vld [vmem:[%s589 + $0x50] sm:$0xff]
                %612 = vst [vmem:[%s590 + $0xa0] sm:$0xff] %v611
                %v613 = vld [vmem:[%s589 + $0x58] sm:$0xff]
                %614 = vst [vmem:[%s590 + $0xa8] sm:$0xff] %v613
                %v615 = vld [vmem:[%s589 + $0x60] sm:$0xff]
                %616 = vst [vmem:[%s590 + $0xc0] sm:$0xff] %v615
                %v617 = vld [vmem:[%s589 + $0x68] sm:$0xff]
                %618 = vst [vmem:[%s590 + $0xc8] sm:$0xff] %v617
                %v619 = vld [vmem:[%s589 + $0x70] sm:$0xff]
                %620 = vst [vmem:[%s590 + $0xe0] sm:$0xff] %v619
                %v621 = vld [vmem:[%s589 + $0x78] sm:$0xff]
                %622 = vst [vmem:[%s590 + $0xe8] sm:$0xff] %v621
              $region80: #{vlstm_forward.2} parent=74 // loop_footer
                %s588 = sadd.s32 1, %s584
              $region81: #{vlstm_forward.2} parent=74 // loop_footer_branch
                %583 = sbr.rel target = $region77
              $region82: #{vlstm_forward.2} parent=74 // loop_exit
                _
            $region75: #{vlstm_forward.2} parent=70 // pred_fallthru
              _
            // Predicated region
            $region83: #{vlstm_forward.2} parent=70 // pred_check
              _
            $region84: #{vlstm_forward.2} parent=70 // pred_check_branch
              %624 = sbr.rel target = $region86
            $region85: #{vlstm_forward.2} parent=70 // pred_region
              _
            $region86: #{vlstm_forward.2} parent=70 // pred_fallthru
              _
          $region71: #{vlstm_forward.2} parent=66 // pred_fallthru
            _
          %625 = vnop
        $region67: #{vlstm_forward.2} parent=50 // pred_fallthru
          _
      $region51: #{vlstm_forward.2} parent=5 // pred_fallthru
        _
      %p626 = scmp.le.s32.totalorder 2, %s9
      // Predicated region
      $region87: #{vlstm_forward.2} parent=5 // pred_check
        %p627 = pneg %p626
      $region88: #{vlstm_forward.2} parent=5 // pred_check_branch
        %629 = sbr.rel (%p627) target = $region90
      $region89: #{vlstm_forward.2} parent=5 // pred_region
        %s630 = ssub.s32 %s9, 2
        // Predicated region
        $region91: #{vlstm_forward.2} parent=89 // pred_check
          %p631 = pneg %p141
        $region92: #{vlstm_forward.2} parent=89 // pred_check_branch
          %633 = sbr.rel (%p631) target = $region94
        $region93: #{vlstm_forward.2} parent=89 // pred_region
          %s634 = sand.u32 %s126, 1
          %s635 = sand.u32 %s126, 1
          %s636 = smul.addr %s635, 128
          %s637 = scalar_lea.vmem [#allocation4], %s636
        $region94: #{vlstm_forward.2} parent=89 // pred_fallthru
          _
      $region90: #{vlstm_forward.2} parent=5 // pred_fallthru
        _
    $region6: #{vlstm_forward.2} parent=1 // loop_footer
      %s13 = sadd.s32 1, %s9
    $region7: #{vlstm_forward.2} parent=1 // loop_footer_branch
      %8 = sbr.rel target = $region3
    $region8: #{vlstm_forward.2} parent=1 // loop_exit
      _

// kernel: vlstm_forward.3
$region0: #{vlstm_forward.3}
  #allocation0 [shape = 'u32[]', space=smem, size = 0x4, offset = 0x4, fixed_abs, tag = 'smem constant byte address 0x4 - core index']
  #allocation1 [shape = 'u32[144,128]{1,0:T(1,128)}', space=vmem, size = 0x12000, scoped, tag = 'internal scratch']
  %s0 = inlined_call_operand.vmem [shape: f32[8,8,512], index: 0, kind: input, shape index: {}]
  %s1 = inlined_call_operand.vmem [shape: f32[128,128], index: 1, kind: input, shape index: {}]
  %s2 = inlined_call_operand.vmem [shape: f32[8,8,128], index: 2, kind: output, shape index: {0}]
  %s3 = inlined_call_operand.vmem [shape: f32[8,128], index: 3, kind: output, shape index: {1}]
  %s4 = inlined_call_operand.vmem [shape: f32[8,128], index: 4, kind: output, shape index: {2}]
  %5 = xla_tuple %s2, %s3, %s4
  %s6 = sld [smem:[#allocation0]]
  $region38: #{vlstm_forward.3} parent=0
    _
  %s8 = ssub.s32 1, %s6
  %s9 = scalar_select 0, %s8, %s6
  // Predicated region
  $region2: #{vlstm_forward.3} parent=0 // pred_check
    _
  $region3: #{vlstm_forward.3} parent=0 // pred_check_branch
    %11 = sbr.rel (0) target = $region5
  $region4: #{vlstm_forward.3} parent=0 // pred_region
    _
  $region5: #{vlstm_forward.3} parent=0 // pred_fallthru
    _
  // Predicated region
  $region6: #{vlstm_forward.3} parent=0 // pred_check
    _
  $region7: #{vlstm_forward.3} parent=0 // pred_check_branch
    %13 = sbr.rel (0) target = $region9
  $region8: #{vlstm_forward.3} parent=0 // pred_region
    _
  $region9: #{vlstm_forward.3} parent=0 // pred_fallthru
    _
  %p14 = scmp.eq.s32.totalorder 0, 0
  // Predicated region
  $region10: #{vlstm_forward.3} parent=0 // pred_check
    %p15 = pneg %p14
  $region11: #{vlstm_forward.3} parent=0 // pred_check_branch
    %17 = sbr.rel (%p15) target = $region13
  $region12: #{vlstm_forward.3} parent=0 // pred_region
    %18 = vst [vmem:[%s3] sm:$0xff] 0.0
    %19 = vst [vmem:[%s4] sm:$0xff] 0.0
  $region13: #{vlstm_forward.3} parent=0 // pred_fallthru
    _
  %v20 = vld [vmem:[%s1] sm:$0xff]
  %v21 = vld [vmem:[%s1 + $0x8] sm:$0xff]
  %v22 = vld [vmem:[%s1 + $0x10] sm:$0xff]
  %v23 = vld [vmem:[%s1 + $0x18] sm:$0xff]
  %v24 = vld [vmem:[%s1 + $0x20] sm:$0xff]
  %v25 = vld [vmem:[%s1 + $0x28] sm:$0xff]
  %v26 = vld [vmem:[%s1 + $0x30] sm:$0xff]
  %v27 = vld [vmem:[%s1 + $0x38] sm:$0xff]
  %v28 = vld [vmem:[%s1 + $0x40] sm:$0xff]
  %v29 = vld [vmem:[%s1 + $0x48] sm:$0xff]
  %v30 = vld [vmem:[%s1 + $0x50] sm:$0xff]
  %v31 = vld [vmem:[%s1 + $0x58] sm:$0xff]
  %v32 = vld [vmem:[%s1 + $0x60] sm:$0xff]
  %v33 = vld [vmem:[%s1 + $0x68] sm:$0xff]
  %v34 = vld [vmem:[%s1 + $0x70] sm:$0xff]
  %v35 = vld [vmem:[%s1 + $0x78] sm:$0xff]
  %v36 = vld [vmem:[%s3] sm:$0xff]
  %v37 = vld [vmem:[%s4] sm:$0xff]
  %v38 = vld [vmem:[%s0] sm:$0xff]
  %v39 = vld [vmem:[%s0 + $0x8] sm:$0xff]
  %v40 = vld [vmem:[%s0 + $0x10] sm:$0xff]
  %v41 = vld [vmem:[%s0 + $0x18] sm:$0xff]
  %42 = vmatprep.subr.mxu0 0.0
  %43 = vmatpush1.msra.mxu0 %v20
  %44 = vmatprep.subr.mxu0 0.0
  %45 = vmatpush1.msra.mxu0 %v21
  %46 = vmatprep.subr.mxu0 0.0
  %47 = vmatpush1.msra.mxu0 %v22
  %48 = vmatprep.subr.mxu0 0.0
  %49 = vmatpush1.msra.mxu0 %v23
  %50 = vmatprep.subr.mxu0 0.0
  %51 = vmatpush1.msra.mxu0 %v24
  %52 = vmatprep.subr.mxu0 0.0
  %53 = vmatpush1.msra.mxu0 %v25
  %54 = vmatprep.subr.mxu0 0.0
  %55 = vmatpush1.msra.mxu0 %v26
  %56 = vmatprep.subr.mxu0 0.0
  %57 = vmatpush1.msra.mxu0 %v27
  %58 = vmatprep.subr.mxu0 0.0
  %59 = vmatpush1.msra.mxu0 %v28
  %60 = vmatprep.subr.mxu0 0.0
  %61 = vmatpush1.msra.mxu0 %v29
  %62 = vmatprep.subr.mxu0 0.0
  %63 = vmatpush1.msra.mxu0 %v30
  %64 = vmatprep.subr.mxu0 0.0
  %65 = vmatpush1.msra.mxu0 %v31
  %66 = vmatprep.subr.mxu0 0.0
  %67 = vmatpush1.msra.mxu0 %v32
  %68 = vmatprep.subr.mxu0 0.0
  %69 = vmatpush1.msra.mxu0 %v33
  %70 = vmatprep.subr.mxu0 0.0
  %71 = vmatpush1.msra.mxu0 %v34
  %72 = vmatprep.subr.mxu0 0.0
  %73 = vmatpush1.msra.mxu0 %v35
  %74 = vmatprep.subr.mxu0 0.0
  %75 = vmatpush1.msra.mxu0 0.0
  %76 = vmatprep.subr.mxu0 0.0
  %77 = vmatpush1.msra.mxu0 0.0
  %78 = vmatprep.subr.mxu0 0.0
  %79 = vmatpush1.msra.mxu0 0.0
  %80 = vmatprep.subr.mxu0 0.0
  %81 = vmatpush1.msra.mxu0 0.0
  %82 = vmatprep.subr.mxu0 0.0
  %83 = vmatpush1.msra.mxu0 0.0
  %84 = vmatprep.subr.mxu0 0.0
  %85 = vmatpush1.msra.mxu0 0.0
  %86 = vmatprep.subr.mxu0 0.0
  %87 = vmatpush1.msra.mxu0 0.0
  %88 = vmatprep.subr.mxu0 0.0
  %89 = vmatpush1.msra.mxu0 0.0
  %90 = vmatprep.subr.mxu0 0.0
  %91 = vmatpush1.msra.mxu0 0.0
  %92 = vmatprep.subr.mxu0 0.0
  %93 = vmatpush1.msra.mxu0 0.0
  %94 = vmatprep.subr.mxu0 0.0
  %95 = vmatpush1.msra.mxu0 0.0
  %96 = vmatprep.subr.mxu0 0.0
  %97 = vmatpush1.msra.mxu0 0.0
  %98 = vmatprep.subr.mxu0 0.0
  %99 = vmatpush1.msra.mxu0 0.0
  %100 = vmatprep.subr.mxu0 0.0
  %101 = vmatpush1.msra.mxu0 0.0
  %102 = vmatprep.subr.mxu0 0.0
  %103 = vmatpush1.msra.mxu0 0.0
  %104 = vmatprep.subr.mxu0 0.0
  %105 = vmatpush1.msra.mxu0 0.0
  %106 = vmatprep.mubr.f32.mxu0 0.0
  %107 = vmatmul.mubr.f32.gmra.mrb[0].mxu0 %v36
  %v108 = vpop.f32.mrb[0].mxu0
  %v109 = vadd.f32 0.0, %v108
  %v110 = vpop.f32.mrb[0].mxu0
  %111 = vdwg.mxu0
  %v112 = vadd.f32 %v38, %v109
  %v113 = vadd.f32 %v39, %v109
  %v114 = vadd.f32 %v40, %v109
  %v115 = vadd.f32 %v41, %v109
  %v116 = vxor.u32 %v112, 2147483648
  %v117 = vxor.u32 %v113, 2147483648
  %v118 = vxor.u32 %v114, 2147483648
  %v119 = vxor.u32 %v115, 2147483648
  %v120 = vmul.f32 %v116, 1.442695
  %v121 = vpow.pop %v120
  %v122 = vmul.f32 %v117, 1.442695
  %v123 = vpow.pop %v122
  %v124 = vmul.f32 %v118, 1.442695
  %v125 = vpow.pop %v124
  %v126 = vmul.f32 %v119, 1.442695
  %v127 = vpow.pop %v126
  %v128 = vadd.f32 %v121, 1.0
  %v129 = vadd.f32 %v123, 1.0
  %v130 = vadd.f32 %v125, 1.0
  %v131 = vadd.f32 %v127, 1.0
  %v132 = vrcp.pop %v128
  %v133 = vmul.f32 1.0, %v132
  %v134 = vrcp.pop %v129
  %v135 = vmul.f32 1.0, %v134
  %v136 = vrcp.pop %v130
  %v137 = vmul.f32 1.0, %v136
  %v138 = vrcp.pop %v131
  %v139 = vmul.f32 1.0, %v138
  %v140 = vadd.f32 %v135, %v37
  %v141 = vmul.f32 %v133, %v137
  %v142 = vadd.f32 %v140, %v141
  %v143 = vtanh.pop %v142
  %v144 = vadd.f32 %v139, %v143
  %145 = vst [vmem:[%s4] sm:$0xff] %v142
  %146 = vst [vmem:[%s3] sm:$0xff] %v144
  %147 = vst [vmem:[%s2] sm:$0xff] %v144
  %v148 = vld [vmem:[%s3] sm:$0xff]
  %v149 = vld [vmem:[%s4] sm:$0xff]
  %s150 = scalar_lea.vmem %s0, 32
  %v151 = vld [vmem:[%s150] sm:$0xff]
  %v152 = vld [vmem:[%s150 + $0x8] sm:$0xff]
  %v153 = vld [vmem:[%s150 + $0x10] sm:$0xff]
  %v154 = vld [vmem:[%s150 + $0x18] sm:$0xff]
  %155 = vmatprep.subr.mxu0 0.0
  %156 = vmatpush1.msra.mxu0 %v20
  %157 = vmatprep.subr.mxu0 0.0
  %158 = vmatpush1.msra.mxu0 %v21
  %159 = vmatprep.subr.mxu0 0.0
  %160 = vmatpush1.msra.mxu0 %v22
  %161 = vmatprep.subr.mxu0 0.0
  %162 = vmatpush1.msra.mxu0 %v23
  %163 = vmatprep.subr.mxu0 0.0
  %164 = vmatpush1.msra.mxu0 %v24
  %165 = vmatprep.subr.mxu0 0.0
  %166 = vmatpush1.msra.mxu0 %v25
  %167 = vmatprep.subr.mxu0 0.0
  %168 = vmatpush1.msra.mxu0 %v26
  %169 = vmatprep.subr.mxu0 0.0
  %170 = vmatpush1.msra.mxu0 %v27
  %171 = vmatprep.subr.mxu0 0.0
  %172 = vmatpush1.msra.mxu0 %v28
  %173 = vmatprep.subr.mxu0 0.0
  %174 = vmatpush1.msra.mxu0 %v29
  %175 = vmatprep.subr.mxu0 0.0
  %176 = vmatpush1.msra.mxu0 %v30
  %177 = vmatprep.subr.mxu0 0.0
  %178 = vmatpush1.msra.mxu0 %v31
  %179 = vmatprep.subr.mxu0 0.0
  %180 = vmatpush1.msra.mxu0 %v32
  %181 = vmatprep.subr.mxu0 0.0
  %182 = vmatpush1.msra.mxu0 %v33
  %183 = vmatprep.subr.mxu0 0.0
  %184 = vmatpush1.msra.mxu0 %v34
  %185 = vmatprep.subr.mxu0 0.0
  %186 = vmatpush1.msra.mxu0 %v35
  %187 = vmatprep.subr.mxu0 0.0
  %188 = vmatpush1.msra.mxu0 0.0
  %189 = vmatprep.subr.mxu0 0.0
  %190 = vmatpush1.msra.mxu0 0.0
  %191 = vmatprep.subr.mxu0 0.0
  %192 = vmatpush1.msra.mxu0 0.0
  %193 = vmatprep.subr.mxu0 0.0
  %194 = vmatpush1.msra.mxu0 0.0
  %195 = vmatprep.subr.mxu0 0.0
  %196 = vmatpush1.msra.mxu0 0.0
  %197 = vmatprep.subr.mxu0 0.0
  %198 = vmatpush1.msra.mxu0 0.0
  %199 = vmatprep.subr.mxu0 0.0
  %200 = vmatpush1.msra.mxu0 0.0
  %201 = vmatprep.subr.mxu0 0.0
  %202 = vmatpush1.msra.mxu0 0.0
  %203 = vmatprep.subr.mxu0 0.0
  %204 = vmatpush1.msra.mxu0 0.0
  %205 = vmatprep.subr.mxu0 0.0
  %206 = vmatpush1.msra.mxu0 0.0
  %207 = vmatprep.subr.mxu0 0.0
  %208 = vmatpush1.msra.mxu0 0.0
  %209 = vmatprep.subr.mxu0 0.0
  %210 = vmatpush1.msra.mxu0 0.0
  %211 = vmatprep.subr.mxu0 0.0
  %212 = vmatpush1.msra.mxu0 0.0
  %213 = vmatprep.subr.mxu0 0.0
  %214 = vmatpush1.msra.mxu0 0.0
  %215 = vmatprep.subr.mxu0 0.0
  %216 = vmatpush1.msra.mxu0 0.0
  %217 = vmatprep.subr.mxu0 0.0
  %218 = vmatpush1.msra.mxu0 0.0
  %219 = vmatprep.mubr.f32.mxu0 0.0
  %220 = vmatmul.mubr.f32.gmra.mrb[0].mxu0 %v148
  %v221 = vpop.f32.mrb[0].mxu0
  %v222 = vadd.f32 0.0, %v221
  %v223 = vpop.f32.mrb[0].mxu0
  %224 = vdwg.mxu0
  %v225 = vadd.f32 %v151, %v222
  %v226 = vadd.f32 %v152, %v222
  %v227 = vadd.f32 %v153, %v222
  %v228 = vadd.f32 %v154, %v222
  %v229 = vxor.u32 %v225, 2147483648
  %v230 = vxor.u32 %v226, 2147483648
  %v231 = vxor.u32 %v227, 2147483648
  %v232 = vxor.u32 %v228, 2147483648
  %v233 = vmul.f32 %v229, 1.442695
  %v234 = vpow.pop %v233
  %v235 = vmul.f32 %v230, 1.442695
  %v236 = vpow.pop %v235
  %v237 = vmul.f32 %v231, 1.442695
  %v238 = vpow.pop %v237
  %v239 = vmul.f32 %v232, 1.442695
  %v240 = vpow.pop %v239
  %v241 = vadd.f32 %v234, 1.0
  %v242 = vadd.f32 %v236, 1.0
  %v243 = vadd.f32 %v238, 1.0
  %v244 = vadd.f32 %v240, 1.0
  %v245 = vrcp.pop %v241
  %v246 = vmul.f32 1.0, %v245
  %v247 = vrcp.pop %v242
  %v248 = vmul.f32 1.0, %v247
  %v249 = vrcp.pop %v243
  %v250 = vmul.f32 1.0, %v249
  %v251 = vrcp.pop %v244
  %v252 = vmul.f32 1.0, %v251
  %v253 = vadd.f32 %v248, %v149
  %v254 = vmul.f32 %v246, %v250
  %v255 = vadd.f32 %v253, %v254
  %v256 = vtanh.pop %v255
  %v257 = vadd.f32 %v252, %v256
  %258 = vst [vmem:[%s4] sm:$0xff] %v255
  %259 = vst [vmem:[%s3] sm:$0xff] %v257
  %s260 = scalar_lea.vmem %s2, 8
  %261 = vst [vmem:[%s260] sm:$0xff] %v257
  %v262 = vld [vmem:[%s3] sm:$0xff]
  %v263 = vld [vmem:[%s4] sm:$0xff]
  %s264 = scalar_lea.vmem %s0, 64
  %v265 = vld [vmem:[%s264] sm:$0xff]
  %v266 = vld [vmem:[%s264 + $0x8] sm:$0xff]
  %v267 = vld [vmem:[%s264 + $0x10] sm:$0xff]
  %v268 = vld [vmem:[%s264 + $0x18] sm:$0xff]
  %269 = vmatprep.subr.mxu0 0.0
  %270 = vmatpush1.msra.mxu0 %v20
  %271 = vmatprep.subr.mxu0 0.0
  %272 = vmatpush1.msra.mxu0 %v21
  %273 = vmatprep.subr.mxu0 0.0
  %274 = vmatpush1.msra.mxu0 %v22
  %275 = vmatprep.subr.mxu0 0.0
  %276 = vmatpush1.msra.mxu0 %v23
  %277 = vmatprep.subr.mxu0 0.0
  %278 = vmatpush1.msra.mxu0 %v24
  %279 = vmatprep.subr.mxu0 0.0
  %280 = vmatpush1.msra.mxu0 %v25
  %281 = vmatprep.subr.mxu0 0.0
  %282 = vmatpush1.msra.mxu0 %v26
  %283 = vmatprep.subr.mxu0 0.0
  %284 = vmatpush1.msra.mxu0 %v27
  %285 = vmatprep.subr.mxu0 0.0
  %286 = vmatpush1.msra.mxu0 %v28
  %287 = vmatprep.subr.mxu0 0.0
  %288 = vmatpush1.msra.mxu0 %v29
  %289 = vmatprep.subr.mxu0 0.0
  %290 = vmatpush1.msra.mxu0 %v30
  %291 = vmatprep.subr.mxu0 0.0
  %292 = vmatpush1.msra.mxu0 %v31
  %293 = vmatprep.subr.mxu0 0.0
  %294 = vmatpush1.msra.mxu0 %v32
  %295 = vmatprep.subr.mxu0 0.0
  %296 = vmatpush1.msra.mxu0 %v33
  %297 = vmatprep.subr.mxu0 0.0
  %298 = vmatpush1.msra.mxu0 %v34
  %299 = vmatprep.subr.mxu0 0.0
  %300 = vmatpush1.msra.mxu0 %v35
  %301 = vmatprep.subr.mxu0 0.0
  %302 = vmatpush1.msra.mxu0 0.0
  %303 = vmatprep.subr.mxu0 0.0
  %304 = vmatpush1.msra.mxu0 0.0
  %305 = vmatprep.subr.mxu0 0.0
  %306 = vmatpush1.msra.mxu0 0.0
  %307 = vmatprep.subr.mxu0 0.0
  %308 = vmatpush1.msra.mxu0 0.0
  %309 = vmatprep.subr.mxu0 0.0
  %310 = vmatpush1.msra.mxu0 0.0
  %311 = vmatprep.subr.mxu0 0.0
  %312 = vmatpush1.msra.mxu0 0.0
  %313 = vmatprep.subr.mxu0 0.0
  %314 = vmatpush1.msra.mxu0 0.0
  %315 = vmatprep.subr.mxu0 0.0
  %316 = vmatpush1.msra.mxu0 0.0
  %317 = vmatprep.subr.mxu0 0.0
  %318 = vmatpush1.msra.mxu0 0.0
  %319 = vmatprep.subr.mxu0 0.0
  %320 = vmatpush1.msra.mxu0 0.0
  %321 = vmatprep.subr.mxu0 0.0
  %322 = vmatpush1.msra.mxu0 0.0
  %323 = vmatprep.subr.mxu0 0.0
  %324 = vmatpush1.msra.mxu0 0.0
  %325 = vmatprep.subr.mxu0 0.0
  %326 = vmatpush1.msra.mxu0 0.0
  %327 = vmatprep.subr.mxu0 0.0
  %328 = vmatpush1.msra.mxu0 0.0
  %329 = vmatprep.subr.mxu0 0.0
  %330 = vmatpush1.msra.mxu0 0.0
  %331 = vmatprep.subr.mxu0 0.0
  %332 = vmatpush1.msra.mxu0 0.0
  %333 = vmatprep.mubr.f32.mxu0 0.0
  %334 = vmatmul.mubr.f32.gmra.mrb[0].mxu0 %v262
  %v335 = vpop.f32.mrb[0].mxu0
  %v336 = vadd.f32 0.0, %v335
  %v337 = vpop.f32.mrb[0].mxu0
  %338 = vdwg.mxu0
  %v339 = vadd.f32 %v265, %v336
  %v340 = vadd.f32 %v266, %v336
  %v341 = vadd.f32 %v267, %v336
  %v342 = vadd.f32 %v268, %v336
  %v343 = vxor.u32 %v339, 2147483648
  %v344 = vxor.u32 %v340, 2147483648
  %v345 = vxor.u32 %v341, 2147483648
  %v346 = vxor.u32 %v342, 2147483648
  %v347 = vmul.f32 %v343, 1.442695
  %v348 = vpow.pop %v347
  %v349 = vmul.f32 %v344, 1.442695
  %v350 = vpow.pop %v349
  %v351 = vmul.f32 %v345, 1.442695
  %v352 = vpow.pop %v351
  %v353 = vmul.f32 %v346, 1.442695
  %v354 = vpow.pop %v353
  %v355 = vadd.f32 %v348, 1.0
  %v356 = vadd.f32 %v350, 1.0
  %v357 = vadd.f32 %v352, 1.0
  %v358 = vadd.f32 %v354, 1.0
  %v359 = vrcp.pop %v355
  %v360 = vmul.f32 1.0, %v359
  %v361 = vrcp.pop %v356
  %v362 = vmul.f32 1.0, %v361
  %v363 = vrcp.pop %v357
  %v364 = vmul.f32 1.0, %v363
  %v365 = vrcp.pop %v358
  %v366 = vmul.f32 1.0, %v365
  %v367 = vadd.f32 %v362, %v263
  %v368 = vmul.f32 %v360, %v364
  %v369 = vadd.f32 %v367, %v368
  %v370 = vtanh.pop %v369
  %v371 = vadd.f32 %v366, %v370
  %372 = vst [vmem:[%s4] sm:$0xff] %v369
  %373 = vst [vmem:[%s3] sm:$0xff] %v371
  %s374 = scalar_lea.vmem %s2, 16
  %375 = vst [vmem:[%s374] sm:$0xff] %v371
  %v376 = vld [vmem:[%s3] sm:$0xff]
  %v377 = vld [vmem:[%s4] sm:$0xff]
  %s378 = scalar_lea.vmem %s0, 96
  %v379 = vld [vmem:[%s378] sm:$0xff]
  %v380 = vld [vmem:[%s378 + $0x8] sm:$0xff]
  %v381 = vld [vmem:[%s378 + $0x10] sm:$0xff]
  %v382 = vld [vmem:[%s378 + $0x18] sm:$0xff]
  %383 = vmatprep.subr.mxu0 0.0
  %384 = vmatpush1.msra.mxu0 %v20
  %385 = vmatprep.subr.mxu0 0.0
  %386 = vmatpush1.msra.mxu0 %v21
  %387 = vmatprep.subr.mxu0 0.0
  %388 = vmatpush1.msra.mxu0 %v22
  %389 = vmatprep.subr.mxu0 0.0
  %390 = vmatpush1.msra.mxu0 %v23
  %391 = vmatprep.subr.mxu0 0.0
  %392 = vmatpush1.msra.mxu0 %v24
  %393 = vmatprep.subr.mxu0 0.0
  %394 = vmatpush1.msra.mxu0 %v25
  %395 = vmatprep.subr.mxu0 0.0
  %396 = vmatpush1.msra.mxu0 %v26
  %397 = vmatprep.subr.mxu0 0.0
  %398 = vmatpush1.msra.mxu0 %v27
  %399 = vmatprep.subr.mxu0 0.0
  %400 = vmatpush1.msra.mxu0 %v28
  %401 = vmatprep.subr.mxu0 0.0
  %402 = vmatpush1.msra.mxu0 %v29
  %403 = vmatprep.subr.mxu0 0.0
  %404 = vmatpush1.msra.mxu0 %v30
  %405 = vmatprep.subr.mxu0 0.0
  %406 = vmatpush1.msra.mxu0 %v31
  %407 = vmatprep.subr.mxu0 0.0
  %408 = vmatpush1.msra.mxu0 %v32
  %409 = vmatprep.subr.mxu0 0.0
  %410 = vmatpush1.msra.mxu0 %v33
  %411 = vmatprep.subr.mxu0 0.0
  %412 = vmatpush1.msra.mxu0 %v34
  %413 = vmatprep.subr.mxu0 0.0
  %414 = vmatpush1.msra.mxu0 %v35
  %415 = vmatprep.subr.mxu0 0.0
  %416 = vmatpush1.msra.mxu0 0.0
  %417 = vmatprep.subr.mxu0 0.0
  %418 = vmatpush1.msra.mxu0 0.0
  %419 = vmatprep.subr.mxu0 0.0
  %420 = vmatpush1.msra.mxu0 0.0
  %421 = vmatprep.subr.mxu0 0.0
  %422 = vmatpush1.msra.mxu0 0.0
  %423 = vmatprep.subr.mxu0 0.0
  %424 = vmatpush1.msra.mxu0 0.0
  %425 = vmatprep.subr.mxu0 0.0
  %426 = vmatpush1.msra.mxu0 0.0
  %427 = vmatprep.subr.mxu0 0.0
  %428 = vmatpush1.msra.mxu0 0.0
  %429 = vmatprep.subr.mxu0 0.0
  %430 = vmatpush1.msra.mxu0 0.0
  %431 = vmatprep.subr.mxu0 0.0
  %432 = vmatpush1.msra.mxu0 0.0
  %433 = vmatprep.subr.mxu0 0.0
  %434 = vmatpush1.msra.mxu0 0.0
  %435 = vmatprep.subr.mxu0 0.0
  %436 = vmatpush1.msra.mxu0 0.0
  %437 = vmatprep.subr.mxu0 0.0
  %438 = vmatpush1.msra.mxu0 0.0
  %439 = vmatprep.subr.mxu0 0.0
  %440 = vmatpush1.msra.mxu0 0.0
  %441 = vmatprep.subr.mxu0 0.0
  %442 = vmatpush1.msra.mxu0 0.0
  %443 = vmatprep.subr.mxu0 0.0
  %444 = vmatpush1.msra.mxu0 0.0
  %445 = vmatprep.subr.mxu0 0.0
  %446 = vmatpush1.msra.mxu0 0.0
  %447 = vmatprep.mubr.f32.mxu0 0.0
  %448 = vmatmul.mubr.f32.gmra.mrb[0].mxu0 %v376
  %v449 = vpop.f32.mrb[0].mxu0
  %v450 = vadd.f32 0.0, %v449
  %v451 = vpop.f32.mrb[0].mxu0
  %452 = vdwg.mxu0
  %v453 = vadd.f32 %v379, %v450
  %v454 = vadd.f32 %v380, %v450
  %v455 = vadd.f32 %v381, %v450
  %v456 = vadd.f32 %v382, %v450
  %v457 = vxor.u32 %v453, 2147483648
  %v458 = vxor.u32 %v454, 2147483648
  %v459 = vxor.u32 %v455, 2147483648
  %v460 = vxor.u32 %v456, 2147483648
  %v461 = vmul.f32 %v457, 1.442695
  %v462 = vpow.pop %v461
  %v463 = vmul.f32 %v458, 1.442695
  %v464 = vpow.pop %v463
  %v465 = vmul.f32 %v459, 1.442695
  %v466 = vpow.pop %v465
  %v467 = vmul.f32 %v460, 1.442695
  %v468 = vpow.pop %v467
  %v469 = vadd.f32 %v462, 1.0
  %v470 = vadd.f32 %v464, 1.0
  %v471 = vadd.f32 %v466, 1.0
  %v472 = vadd.f32 %v468, 1.0
  %v473 = vrcp.pop %v469
  %v474 = vmul.f32 1.0, %v473
  %v475 = vrcp.pop %v470
  %v476 = vmul.f32 1.0, %v475
  %v477 = vrcp.pop %v471
  %v478 = vmul.f32 1.0, %v477
  %v479 = vrcp.pop %v472
  %v480 = vmul.f32 1.0, %v479
  %v481 = vadd.f32 %v476, %v377
  %v482 = vmul.f32 %v474, %v478
  %v483 = vadd.f32 %v481, %v482
  %v484 = vtanh.pop %v483
  %v485 = vadd.f32 %v480, %v484
  %486 = vst [vmem:[%s4] sm:$0xff] %v483
  %487 = vst [vmem:[%s3] sm:$0xff] %v485
  %s488 = scalar_lea.vmem %s2, 24
  %489 = vst [vmem:[%s488] sm:$0xff] %v485
  %v490 = vld [vmem:[%s3] sm:$0xff]
  %v491 = vld [vmem:[%s4] sm:$0xff]
  %s492 = scalar_lea.vmem %s0, 128
  %v493 = vld [vmem:[%s492] sm:$0xff]
  %v494 = vld [vmem:[%s492 + $0x8] sm:$0xff]
  %v495 = vld [vmem:[%s492 + $0x10] sm:$0xff]
  %v496 = vld [vmem:[%s492 + $0x18] sm:$0xff]
  %497 = vmatprep.subr.mxu0 0.0
  %498 = vmatpush1.msra.mxu0 %v20
  %499 = vmatprep.subr.mxu0 0.0
  %500 = vmatpush1.msra.mxu0 %v21
  %501 = vmatprep.subr.mxu0 0.0
  %502 = vmatpush1.msra.mxu0 %v22
  %503 = vmatprep.subr.mxu0 0.0
  %504 = vmatpush1.msra.mxu0 %v23
  %505 = vmatprep.subr.mxu0 0.0
  %506 = vmatpush1.msra.mxu0 %v24
  %507 = vmatprep.subr.mxu0 0.0
  %508 = vmatpush1.msra.mxu0 %v25
  %509 = vmatprep.subr.mxu0 0.0
  %510 = vmatpush1.msra.mxu0 %v26
  %511 = vmatprep.subr.mxu0 0.0
  %512 = vmatpush1.msra.mxu0 %v27
  %513 = vmatprep.subr.mxu0 0.0
  %514 = vmatpush1.msra.mxu0 %v28
  %515 = vmatprep.subr.mxu0 0.0
  %516 = vmatpush1.msra.mxu0 %v29
  %517 = vmatprep.subr.mxu0 0.0
  %518 = vmatpush1.msra.mxu0 %v30
  %519 = vmatprep.subr.mxu0 0.0
  %520 = vmatpush1.msra.mxu0 %v31
  %521 = vmatprep.subr.mxu0 0.0
  %522 = vmatpush1.msra.mxu0 %v32
  %523 = vmatprep.subr.mxu0 0.0
  %524 = vmatpush1.msra.mxu0 %v33
  %525 = vmatprep.subr.mxu0 0.0
  %526 = vmatpush1.msra.mxu0 %v34
  %527 = vmatprep.subr.mxu0 0.0
  %528 = vmatpush1.msra.mxu0 %v35
  %529 = vmatprep.subr.mxu0 0.0
  %530 = vmatpush1.msra.mxu0 0.0
  %531 = vmatprep.subr.mxu0 0.0
  %532 = vmatpush1.msra.mxu0 0.0
  %533 = vmatprep.subr.mxu0 0.0
  %534 = vmatpush1.msra.mxu0 0.0
  %535 = vmatprep.subr.mxu0 0.0
  %536 = vmatpush1.msra.mxu0 0.0
  %537 = vmatprep.subr.mxu0 0.0
  %538 = vmatpush1.msra.mxu0 0.0
  %539 = vmatprep.subr.mxu0 0.0
  %540 = vmatpush1.msra.mxu0 0.0
  %541 = vmatprep.subr.mxu0 0.0
  %542 = vmatpush1.msra.mxu0 0.0
  %543 = vmatprep.subr.mxu0 0.0
  %544 = vmatpush1.msra.mxu0 0.0
  %545 = vmatprep.subr.mxu0 0.0
  %546 = vmatpush1.msra.mxu0 0.0
  %547 = vmatprep.subr.mxu0 0.0
  %548 = vmatpush1.msra.mxu0 0.0
  %549 = vmatprep.subr.mxu0 0.0
  %550 = vmatpush1.msra.mxu0 0.0
  %551 = vmatprep.subr.mxu0 0.0
  %552 = vmatpush1.msra.mxu0 0.0
  %553 = vmatprep.subr.mxu0 0.0
  %554 = vmatpush1.msra.mxu0 0.0
  %555 = vmatprep.subr.mxu0 0.0
  %556 = vmatpush1.msra.mxu0 0.0
  %557 = vmatprep.subr.mxu0 0.0
  %558 = vmatpush1.msra.mxu0 0.0
  %559 = vmatprep.subr.mxu0 0.0
  %560 = vmatpush1.msra.mxu0 0.0
  %561 = vmatprep.mubr.f32.mxu0 0.0
  %562 = vmatmul.mubr.f32.gmra.mrb[0].mxu0 %v490
  %v563 = vpop.f32.mrb[0].mxu0
  %v564 = vadd.f32 0.0, %v563
  %v565 = vpop.f32.mrb[0].mxu0
  %566 = vdwg.mxu0
  %v567 = vadd.f32 %v493, %v564
  %v568 = vadd.f32 %v494, %v564
  %v569 = vadd.f32 %v495, %v564
  %v570 = vadd.f32 %v496, %v564
  %v571 = vxor.u32 %v567, 2147483648
  %v572 = vxor.u32 %v568, 2147483648
  %v573 = vxor.u32 %v569, 2147483648
  %v574 = vxor.u32 %v570, 2147483648
  %v575 = vmul.f32 %v571, 1.442695
  %v576 = vpow.pop %v575
  %v577 = vmul.f32 %v572, 1.442695
  %v578 = vpow.pop %v577
  %v579 = vmul.f32 %v573, 1.442695
  %v580 = vpow.pop %v579
  %v581 = vmul.f32 %v574, 1.442695
  %v582 = vpow.pop %v581
  %v583 = vadd.f32 %v576, 1.0
  %v584 = vadd.f32 %v578, 1.0
  %v585 = vadd.f32 %v580, 1.0
  %v586 = vadd.f32 %v582, 1.0
  %v587 = vrcp.pop %v583
  %v588 = vmul.f32 1.0, %v587
  %v589 = vrcp.pop %v584
  %v590 = vmul.f32 1.0, %v589
  %v591 = vrcp.pop %v585
  %v592 = vmul.f32 1.0, %v591
  %v593 = vrcp.pop %v586
  %v594 = vmul.f32 1.0, %v593
  %v595 = vadd.f32 %v590, %v491
  %v596 = vmul.f32 %v588, %v592
  %v597 = vadd.f32 %v595, %v596
  %v598 = vtanh.pop %v597
  %v599 = vadd.f32 %v594, %v598
  %600 = vst [vmem:[%s4] sm:$0xff] %v597
  %601 = vst [vmem:[%s3] sm:$0xff] %v599
  %s602 = scalar_lea.vmem %s2, 32
  %603 = vst [vmem:[%s602] sm:$0xff] %v599
  %v604 = vld [vmem:[%s3] sm:$0xff]
  %v605 = vld [vmem:[%s4] sm:$0xff]
  %s606 = scalar_lea.vmem %s0, 160
  %v607 = vld [vmem:[%s606] sm:$0xff]
  %v608 = vld [vmem:[%s606 + $0x8] sm:$0xff]
  %v609 = vld [vmem:[%s606 + $0x10] sm:$0xff]
  %v610 = vld [vmem:[%s606 + $0x18] sm:$0xff]
  %611 = vmatprep.subr.mxu0 0.0
  %612 = vmatpush1.msra.mxu0 %v20
  %613 = vmatprep.subr.mxu0 0.0
  %614 = vmatpush1.msra.mxu0 %v21
  %615 = vmatprep.subr.mxu0 0.0
  %616 = vmatpush1.msra.mxu0 %v22
  %617 = vmatprep.subr.mxu0 0.0
  %618 = vmatpush1.msra.mxu0 %v23
  %619 = vmatprep.subr.mxu0 0.0
  %620 = vmatpush1.msra.mxu0 %v24
  %621 = vmatprep.subr.mxu0 0.0
  %622 = vmatpush1.msra.mxu0 %v25
  %623 = vmatprep.subr.mxu0 0.0
  %624 = vmatpush1.msra.mxu0 %v26
  %625 = vmatprep.subr.mxu0 0.0
  %626 = vmatpush1.msra.mxu0 %v27
  %627 = vmatprep.subr.mxu0 0.0
  %628 = vmatpush1.msra.mxu0 %v28
  %629 = vmatprep.subr.mxu0 0.0
  %630 = vmatpush1.msra.mxu0 %v29
  %631 = vmatprep.subr.mxu0 0.0
  %632 = vmatpush1.msra.mxu0 %v30
  %633 = vmatprep.subr.mxu0 0.0
  %634 = vmatpush1.msra.mxu0 %v31
  %635 = vmatprep.subr.mxu0 0.0
  %636 = vmatpush1.msra.mxu0 %v32
  %637 = vmatprep.subr.mxu0 0.0
  %638 = vmatpush1.msra.mxu0 %v33
  %639 = vmatprep.subr.mxu0 0.0
  %640 = vmatpush1.msra.mxu0 %v34
  %641 = vmatprep.subr.mxu0 0.0
  %642 = vmatpush1.msra.mxu0 %v35
  %643 = vmatprep.subr.mxu0 0.0
  %644 = vmatpush1.msra.mxu0 0.0
  %645 = vmatprep.subr.mxu0 0.0
  %646 = vmatpush1.msra.mxu0 0.0
  %647 = vmatprep.subr.mxu0 0.0
  %648 = vmatpush1.msra.mxu0 0.0
  %649 = vmatprep.subr.mxu0 0.0
  %650 = vmatpush1.msra.mxu0 0.0
  %651 = vmatprep.subr.mxu0 0.0
  %652 = vmatpush1.msra.mxu0 0.0
  %653 = vmatprep.subr.mxu0 0.0
  %654 = vmatpush1.msra.mxu0 0.0
  %655 = vmatprep.subr.mxu0 0.0
  %656 = vmatpush1.msra.mxu0 0.0
  %657 = vmatprep.subr.mxu0 0.0
  %658 = vmatpush1.msra.mxu0 0.0
  %659 = vmatprep.subr.mxu0 0.0
  %660 = vmatpush1.msra.mxu0 0.0
  %661 = vmatprep.subr.mxu0 0.0
  %662 = vmatpush1.msra.mxu0 0.0
  %663 = vmatprep.subr.mxu0 0.0
  %664 = vmatpush1.msra.mxu0 0.0
  %665 = vmatprep.subr.mxu0 0.0
  %666 = vmatpush1.msra.mxu0 0.0
  %667 = vmatprep.subr.mxu0 0.0
  %668 = vmatpush1.msra.mxu0 0.0
  %669 = vmatprep.subr.mxu0 0.0
  %670 = vmatpush1.msra.mxu0 0.0
  %671 = vmatprep.subr.mxu0 0.0
  %672 = vmatpush1.msra.mxu0 0.0
  %673 = vmatprep.subr.mxu0 0.0
  %674 = vmatpush1.msra.mxu0 0.0
  %675 = vmatprep.mubr.f32.mxu0 0.0
  %676 = vmatmul.mubr.f32.gmra.mrb[0].mxu0 %v604
  %v677 = vpop.f32.mrb[0].mxu0
  %v678 = vadd.f32 0.0, %v677
  %v679 = vpop.f32.mrb[0].mxu0
  %680 = vdwg.mxu0
  %v681 = vadd.f32 %v607, %v678
  %v682 = vadd.f32 %v608, %v678
  %v683 = vadd.f32 %v609, %v678
  %v684 = vadd.f32 %v610, %v678
  %v685 = vxor.u32 %v681, 2147483648
  %v686 = vxor.u32 %v682, 2147483648
  %v687 = vxor.u32 %v683, 2147483648
  %v688 = vxor.u32 %v684, 2147483648
  %v689 = vmul.f32 %v685, 1.442695
  %v690 = vpow.pop %v689
  %v691 = vmul.f32 %v686, 1.442695
  %v692 = vpow.pop %v691
  %v693 = vmul.f32 %v687, 1.442695
  %v694 = vpow.pop %v693
  %v695 = vmul.f32 %v688, 1.442695
  %v696 = vpow.pop %v695
  %v697 = vadd.f32 %v690, 1.0
  %v698 = vadd.f32 %v692, 1.0
  %v699 = vadd.f32 %v694, 1.0
  %v700 = vadd.f32 %v696, 1.0
  %v701 = vrcp.pop %v697
  %v702 = vmul.f32 1.0, %v701
  %v703 = vrcp.pop %v698
  %v704 = vmul.f32 1.0, %v703
  %v705 = vrcp.pop %v699
  %v706 = vmul.f32 1.0, %v705
  %v707 = vrcp.pop %v700
  %v708 = vmul.f32 1.0, %v707
  %v709 = vadd.f32 %v704, %v605
  %v710 = vmul.f32 %v702, %v706
  %v711 = vadd.f32 %v709, %v710
  %v712 = vtanh.pop %v711
  %v713 = vadd.f32 %v708, %v712
  %714 = vst [vmem:[%s4] sm:$0xff] %v711
  %715 = vst [vmem:[%s3] sm:$0xff] %v713
  %s716 = scalar_lea.vmem %s2, 40
  %717 = vst [vmem:[%s716] sm:$0xff] %v713
  %v718 = vld [vmem:[%s3] sm:$0xff]
  %v719 = vld [vmem:[%s4] sm:$0xff]
  %s720 = scalar_lea.vmem %s0, 192
  %v721 = vld [vmem:[%s720] sm:$0xff]
  %v722 = vld [vmem:[%s720 + $0x8] sm:$0xff]
  %v723 = vld [vmem:[%s720 + $0x10] sm:$0xff]
  %v724 = vld [vmem:[%s720 + $0x18] sm:$0xff]
  %725 = vmatprep.subr.mxu0 0.0
  %726 = vmatpush1.msra.mxu0 %v20
  %727 = vmatprep.subr.mxu0 0.0
  %728 = vmatpush1.msra.mxu0 %v21
  %729 = vmatprep.subr.mxu0 0.0
  %730 = vmatpush1.msra.mxu0 %v22
  %731 = vmatprep.subr.mxu0 0.0
  %732 = vmatpush1.msra.mxu0 %v23
  %733 = vmatprep.subr.mxu0 0.0
  %734 = vmatpush1.msra.mxu0 %v24
  %735 = vmatprep.subr.mxu0 0.0
  %736 = vmatpush1.msra.mxu0 %v25
  %737 = vmatprep.subr.mxu0 0.0
  %738 = vmatpush1.msra.mxu0 %v26
  %739 = vmatprep.subr.mxu0 0.0
  %740 = vmatpush1.msra.mxu0 %v27
  %741 = vmatprep.subr.mxu0 0.0
  %742 = vmatpush1.msra.mxu0 %v28
  %743 = vmatprep.subr.mxu0 0.0
  %744 = vmatpush1.msra.mxu0 %v29
  %745 = vmatprep.subr.mxu0 0.0
  %746 = vmatpush1.msra.mxu0 %v30
  %747 = vmatprep.subr.mxu0 0.0
  %748 = vmatpush1.msra.mxu0 %v31
  %749 = vmatprep.subr.mxu0 0.0
  %750 = vmatpush1.msra.mxu0 %v32
  %751 = vmatprep.subr.mxu0 0.0
  %752 = vmatpush1.msra.mxu0 %v33
  %753 = vmatprep.subr.mxu0 0.0
  %754 = vmatpush1.msra.mxu0 %v34
  %755 = vmatprep.subr.mxu0 0.0
  %756 = vmatpush1.msra.mxu0 %v35
  %757 = vmatprep.subr.mxu0 0.0
  %758 = vmatpush1.msra.mxu0 0.0
  %759 = vmatprep.subr.mxu0 0.0
  %760 = vmatpush1.msra.mxu0 0.0
  %761 = vmatprep.subr.mxu0 0.0
  %762 = vmatpush1.msra.mxu0 0.0
  %763 = vmatprep.subr.mxu0 0.0
  %764 = vmatpush1.msra.mxu0 0.0
  %765 = vmatprep.subr.mxu0 0.0
  %766 = vmatpush1.msra.mxu0 0.0
  %767 = vmatprep.subr.mxu0 0.0
  %768 = vmatpush1.msra.mxu0 0.0
  %769 = vmatprep.subr.mxu0 0.0
  %770 = vmatpush1.msra.mxu0 0.0
  %771 = vmatprep.subr.mxu0 0.0
  %772 = vmatpush1.msra.mxu0 0.0
  %773 = vmatprep.subr.mxu0 0.0
  %774 = vmatpush1.msra.mxu0 0.0
  %775 = vmatprep.subr.mxu0 0.0
  %776 = vmatpush1.msra.mxu0 0.0
  %777 = vmatprep.subr.mxu0 0.0
  %778 = vmatpush1.msra.mxu0 0.0
  %779 = vmatprep.subr.mxu0 0.0
  %780 = vmatpush1.msra.mxu0 0.0
  %781 = vmatprep.subr.mxu0 0.0
  %782 = vmatpush1.msra.mxu0 0.0
  %783 = vmatprep.subr.mxu0 0.0
  %784 = vmatpush1.msra.mxu0 0.0
  %785 = vmatprep.subr.mxu0 0.0
  %786 = vmatpush1.msra.mxu0 0.0
  %787 = vmatprep.subr.mxu0 0.0
  %788 = vmatpush1.msra.mxu0 0.0
  %789 = vmatprep.mubr.f32.mxu0 0.0
  %790 = vmatmul.mubr.f32.gmra.mrb[0].mxu0 %v718
  %v791 = vpop.f32.mrb[0].mxu0
  %v792 = vadd.f32 0.0, %v791
  %v793 = vpop.f32.mrb[0].mxu0
  %794 = vdwg.mxu0
  %v795 = vadd.f32 %v721, %v792
  %v796 = vadd.f32 %v722, %v792
  %v797 = vadd.f32 %v723, %v792
  %v798 = vadd.f32 %v724, %v792
  %v799 = vxor.u32 %v795, 2147483648
  %v800 = vxor.u32 %v796, 2147483648
  %v801 = vxor.u32 %v797, 2147483648
  %v802 = vxor.u32 %v798, 2147483648
  %v803 = vmul.f32 %v799, 1.442695
  %v804 = vpow.pop %v803
  %v805 = vmul.f32 %v800, 1.442695
  %v806 = vpow.pop %v805
  %v807 = vmul.f32 %v801, 1.442695
  %v808 = vpow.pop %v807
  %v809 = vmul.f32 %v802, 1.442695
  %v810 = vpow.pop %v809
  %v811 = vadd.f32 %v804, 1.0
  %v812 = vadd.f32 %v806, 1.0
  %v813 = vadd.f32 %v808, 1.0
  %v814 = vadd.f32 %v810, 1.0
  %v815 = vrcp.pop %v811
  %v816 = vmul.f32 1.0, %v815
  %v817 = vrcp.pop %v812
  %v818 = vmul.f32 1.0, %v817
  %v819 = vrcp.pop %v813
  %v820 = vmul.f32 1.0, %v819
  %v821 = vrcp.pop %v814
  %v822 = vmul.f32 1.0, %v821
  %v823 = vadd.f32 %v818, %v719
  %v824 = vmul.f32 %v816, %v820
  %v825 = vadd.f32 %v823, %v824
  %v826 = vtanh.pop %v825
  %v827 = vadd.f32 %v822, %v826
  %828 = vst [vmem:[%s4] sm:$0xff] %v825
  %829 = vst [vmem:[%s3] sm:$0xff] %v827
  %s830 = scalar_lea.vmem %s2, 48
  %831 = vst [vmem:[%s830] sm:$0xff] %v827
  %v832 = vld [vmem:[%s3] sm:$0xff]
  %v833 = vld [vmem:[%s4] sm:$0xff]
  %s834 = scalar_lea.vmem %s0, 224
  %v835 = vld [vmem:[%s834] sm:$0xff]
  %v836 = vld [vmem:[%s834 + $0x8] sm:$0xff]
  %v837 = vld [vmem:[%s834 + $0x10] sm:$0xff]
  %v838 = vld [vmem:[%s834 + $0x18] sm:$0xff]
  %839 = vmatprep.subr.mxu0 0.0
  %840 = vmatpush1.msra.mxu0 %v20
  %841 = vmatprep.subr.mxu0 0.0
  %842 = vmatpush1.msra.mxu0 %v21
  %843 = vmatprep.subr.mxu0 0.0
  %844 = vmatpush1.msra.mxu0 %v22
  %845 = vmatprep.subr.mxu0 0.0
  %846 = vmatpush1.msra.mxu0 %v23
  %847 = vmatprep.subr.mxu0 0.0
  %848 = vmatpush1.msra.mxu0 %v24
  %849 = vmatprep.subr.mxu0 0.0
  %850 = vmatpush1.msra.mxu0 %v25
  %851 = vmatprep.subr.mxu0 0.0
  %852 = vmatpush1.msra.mxu0 %v26
  %853 = vmatprep.subr.mxu0 0.0
  %854 = vmatpush1.msra.mxu0 %v27
  %855 = vmatprep.subr.mxu0 0.0
  %856 = vmatpush1.msra.mxu0 %v28
  %857 = vmatprep.subr.mxu0 0.0
  %858 = vmatpush1.msra.mxu0 %v29
  %859 = vmatprep.subr.mxu0 0.0
  %860 = vmatpush1.msra.mxu0 %v30
  %861 = vmatprep.subr.mxu0 0.0
  %862 = vmatpush1.msra.mxu0 %v31
  %863 = vmatprep.subr.mxu0 0.0
  %864 = vmatpush1.msra.mxu0 %v32
  %865 = vmatprep.subr.mxu0 0.0
  %866 = vmatpush1.msra.mxu0 %v33
  %867 = vmatprep.subr.mxu0 0.0
  %868 = vmatpush1.msra.mxu0 %v34
  %869 = vmatprep.subr.mxu0 0.0
  %870 = vmatpush1.msra.mxu0 %v35
  %871 = vmatprep.subr.mxu0 0.0
  %872 = vmatpush1.msra.mxu0 0.0
  %873 = vmatprep.subr.mxu0 0.0
  %874 = vmatpush1.msra.mxu0 0.0
  %875 = vmatprep.subr.mxu0 0.0
  %876 = vmatpush1.msra.mxu0 0.0
  %877 = vmatprep.subr.mxu0 0.0
  %878 = vmatpush1.msra.mxu0 0.0
  %879 = vmatprep.subr.mxu0 0.0
  %880 = vmatpush1.msra.mxu0 0.0
  %881 = vmatprep.subr.mxu0 0.0
  %882 = vmatpush1.msra.mxu0 0.0
  %883 = vmatprep.subr.mxu0 0.0
  %884 = vmatpush1.msra.mxu0 0.0
  %885 = vmatprep.subr.mxu0 0.0
  %886 = vmatpush1.msra.mxu0 0.0
  %887 = vmatprep.subr.mxu0 0.0
  %888 = vmatpush1.msra.mxu0 0.0
  %889 = vmatprep.subr.mxu0 0.0
  %890 = vmatpush1.msra.mxu0 0.0
  %891 = vmatprep.subr.mxu0 0.0
  %892 = vmatpush1.msra.mxu0 0.0
  %893 = vmatprep.subr.mxu0 0.0
  %894 = vmatpush1.msra.mxu0 0.0
  %895 = vmatprep.subr.mxu0 0.0
  %896 = vmatpush1.msra.mxu0 0.0
  %897 = vmatprep.subr.mxu0 0.0
  %898 = vmatpush1.msra.mxu0 0.0
  %899 = vmatprep.subr.mxu0 0.0
  %900 = vmatpush1.msra.mxu0 0.0
  %901 = vmatprep.subr.mxu0 0.0
  %902 = vmatpush1.msra.mxu0 0.0
  %903 = vmatprep.mubr.f32.mxu0 0.0
  %904 = vmatmul.mubr.f32.gmra.mrb[0].mxu0 %v832
  %v905 = vpop.f32.mrb[0].mxu0
  %v906 = vadd.f32 0.0, %v905
  %v907 = vpop.f32.mrb[0].mxu0
  %908 = vdwg.mxu0
  %v909 = vadd.f32 %v835, %v906
  %v910 = vadd.f32 %v836, %v906
  %v911 = vadd.f32 %v837, %v906
  %v912 = vadd.f32 %v838, %v906
  %v913 = vxor.u32 %v909, 2147483648
  %v914 = vxor.u32 %v910, 2147483648
  %v915 = vxor.u32 %v911, 2147483648
  %v916 = vxor.u32 %v912, 2147483648
  %v917 = vmul.f32 %v913, 1.442695
  %v918 = vpow.pop %v917
  %v919 = vmul.f32 %v914, 1.442695
  %v920 = vpow.pop %v919
  %v921 = vmul.f32 %v915, 1.442695
  %v922 = vpow.pop %v921
  %v923 = vmul.f32 %v916, 1.442695
  %v924 = vpow.pop %v923
  %v925 = vadd.f32 %v918, 1.0
  %v926 = vadd.f32 %v920, 1.0
  %v927 = vadd.f32 %v922, 1.0
  %v928 = vadd.f32 %v924, 1.0
  %v929 = vrcp.pop %v925
  %v930 = vmul.f32 1.0, %v929
  %v931 = vrcp.pop %v926
  %v932 = vmul.f32 1.0, %v931
  %v933 = vrcp.pop %v927
  %v934 = vmul.f32 1.0, %v933
  %v935 = vrcp.pop %v928
  %v936 = vmul.f32 1.0, %v935
  %v937 = vadd.f32 %v932, %v833
  %v938 = vmul.f32 %v930, %v934
  %v939 = vadd.f32 %v937, %v938
  %v940 = vtanh.pop %v939
  %v941 = vadd.f32 %v936, %v940
  %942 = vst [vmem:[%s4] sm:$0xff] %v939
  %943 = vst [vmem:[%s3] sm:$0xff] %v941
  %s944 = scalar_lea.vmem %s2, 56
  %945 = vst [vmem:[%s944] sm:$0xff] %v941
  // Predicated region
  $region14: #{vlstm_forward.3} parent=0 // pred_check
    _
  $region15: #{vlstm_forward.3} parent=0 // pred_check_branch
    %947 = sbr.rel (0) target = $region17
  $region16: #{vlstm_forward.3} parent=0 // pred_region
    _
  $region17: #{vlstm_forward.3} parent=0 // pred_fallthru
    _
  // Predicated region
  $region18: #{vlstm_forward.3} parent=0 // pred_check
    _
  $region19: #{vlstm_forward.3} parent=0 // pred_check_branch
    %949 = sbr.rel (0) target = $region21
  $region20: #{vlstm_forward.3} parent=0 // pred_region
    _
  $region21: #{vlstm_forward.3} parent=0 // pred_fallthru
    _
  // Predicated region
  $region22: #{vlstm_forward.3} parent=0 // pred_check
    _
  $region23: #{vlstm_forward.3} parent=0 // pred_check_branch
    %951 = sbr.rel (0) target = $region25
  $region24: #{vlstm_forward.3} parent=0 // pred_region
    _
  $region25: #{vlstm_forward.3} parent=0 // pred_fallthru
    _
  // Predicated region
  $region26: #{vlstm_forward.3} parent=0 // pred_check
    _
  $region27: #{vlstm_forward.3} parent=0 // pred_check_branch
    %953 = sbr.rel (0) target = $region29
  $region28: #{vlstm_forward.3} parent=0 // pred_region
    _
  $region29: #{vlstm_forward.3} parent=0 // pred_fallthru
    _
  // Predicated region
  $region30: #{vlstm_forward.3} parent=0 // pred_check
    _
  $region31: #{vlstm_forward.3} parent=0 // pred_check_branch
    %955 = sbr.rel (0) target = $region33
  $region32: #{vlstm_forward.3} parent=0 // pred_region
    _
  $region33: #{vlstm_forward.3} parent=0 // pred_fallthru
    _
  // Predicated region
  $region34: #{vlstm_forward.3} parent=0 // pred_check
    _
  $region35: #{vlstm_forward.3} parent=0 // pred_check_branch
    %957 = sbr.rel (0) target = $region37
  $region36: #{vlstm_forward.3} parent=0 // pred_region
    _
  $region37: #{vlstm_forward.3} parent=0 // pred_fallthru
    _

</llo_original>
